<compile_context>
chip_gen: v7x
topology: tpu7x:2x2x1
jax: 0.10.0
libtpu: 0.0.40
codegen_flags: <defaults>
</compile_context>

<pallas_src>
import functools

import jax
import jax.numpy as jnp
from jax.experimental import pallas as pl
from jax.experimental.pallas import tpu as pltpu

EPS = 1e-5  # PyTorch BatchNorm2d default


def residual_block_kernel(x_ref, w_ref, bn_ref, o_ref, pad_ref, *, N, H, W, C):
    # x_ref  : (N*H, W*C)        lane-dense activation view, f32
    # w_ref  : (2, 3, W*C, W*C)  block-tridiagonal conv slabs (one per kh)
    # bn_ref : (4, C)            [gamma1, beta1, gamma2, beta2]
    # o_ref  : (N*H, W*C)        lane-dense output
    # pad_ref: (N, H+2, W*C)     row-halo scratch, lane-dense
    WC = W * C

    # Zero only the halo rows (scratch is not zero-initialized); the interior
    # is fully overwritten before every read and the halo stays zero across
    # both convs.
    halo = jnp.zeros((N, 1, WC), jnp.float32)
    pad_ref[:, 0:1, :] = halo
    pad_ref[:, H + 1:H + 2, :] = halo

    def conv3x3(inp2d, widx):
        # Stage the input with a 1-row halo per batch, then one accumulated
        # MXU matmul per row shift kh against the banded (W*C, W*C) slab.
        # Width padding is encoded in the band structure (missing blocks = 0).
        pad_ref[:, 1:H + 1, :] = inp2d.reshape(N, H, WC)
        acc = None
        for kh in range(3):
            xs = pad_ref[:, kh:kh + H, :].reshape(N * H, WC)
            p = jnp.dot(xs, w_ref[widx, kh],
                        preferred_element_type=jnp.float32)
            acc = p if acc is None else acc + p
        # Conv bias intentionally omitted: cancelled exactly by BN mean-sub.
        return acc                                            # (N*H, W*C)

    def bn_relu(flat, g, b):
        # Training-mode BatchNorm2d; affine folded into per-channel (a, b) so
        # the big tensor sees one mul + one add.  Stats single-pass, reduced
        # on a tiny (1, W*C) vector (no relayout of the activation).
        inv_n = 1.0 / (N * H * W)
        s = jnp.sum(flat, axis=0, keepdims=True)              # (1, W*C)
        ss = jnp.sum(flat * flat, axis=0, keepdims=True)      # (1, W*C)
        s_c, ss_c = s[:, 0:C], ss[:, 0:C]
        for w in range(1, W):                                 # fold W groups
            s_c = s_c + s[:, w * C:(w + 1) * C]
            ss_c = ss_c + ss[:, w * C:(w + 1) * C]
        mean = s_c * inv_n
        var = jnp.maximum(ss_c * inv_n - mean * mean, 0.0)    # clamp >= 0
        a = jax.lax.rsqrt(var + EPS) * g                      # (1, C)
        bb = b - mean * a                                     # (1, C)
        a_l = jnp.concatenate([a] * W, axis=-1)               # (1, W*C)
        b_l = jnp.concatenate([bb] * W, axis=-1)              # (1, W*C)
        return jnp.maximum(flat * a_l + b_l, 0.0)

    x = x_ref[...]                                            # (N*H, W*C)
    y = conv3x3(x, 0)
    y = bn_relu(y, bn_ref[0:1, :], bn_ref[1:2, :])
    y = conv3x3(y, 1)
    y = bn_relu(y, bn_ref[2:3, :], bn_ref[3:4, :])
    # Lane-dense epilogue: residual add + unmasked full-lane store.
    o_ref[...] = y + x


def _band_slabs(w_hwio, W, C):
    """(3, 3, C, C) HWIO conv weight -> (3, W*C, W*C) block-tridiagonal slabs.

    slab[kh][w_in*C + ci, w_out*C + co] = w_hwio[kh, kw, ci, co] with
    w_in = w_out + kw - 1 (zero outside the band), so the width dimension of a
    3x3 'same' conv becomes a single lane-dense matmul per row shift.
    """
    slabs = []
    for kh in range(3):
        m = jnp.zeros((W * C, W * C), jnp.float32)
        for kw in range(3):
            e = jnp.eye(W, k=-(kw - 1), dtype=jnp.float32)    # w_in = w_out+kw-1
            m = m + jnp.einsum("ab,ij->aibj", e,
                               w_hwio[kh, kw]).reshape(W * C, W * C)
        slabs.append(m)
    return jnp.stack(slabs)


def residual_block(x_nhwc, params):
    N, H, W, C = x_nhwc.shape
    w1, b1, g1, be1, w2, b2, g2, be2 = params
    del b1, b2  # mathematically a no-op under training-mode BN

    # Pack params: banded lane-dense conv slabs (no VMEM lane padding) and all
    # four BN vectors -> 3 input DMAs total.
    w_slabs = jnp.stack([_band_slabs(w1, W, C), _band_slabs(w2, W, C)])
    bn_packed = jnp.stack([g1, be1, g2, be2])
    x2d = x_nhwc.reshape(N * H, W * C)        # free bitcast-reshape in XLA

    kernel = functools.partial(residual_block_kernel, N=N, H=H, W=W, C=C)
    vmem = pl.BlockSpec(memory_space=pltpu.MemorySpace.VMEM)

    flops = 2 * 3 * 2 * (N * H) * (W * C) * (W * C)   # 2 convs x 3 row shifts
    bytes_accessed = 4 * (2 * x2d.size + w_slabs.size + bn_packed.size)

    out2d = pl.pallas_call(
        kernel,
        out_shape=jax.ShapeDtypeStruct((N * H, W * C), jnp.float32),
        in_specs=[vmem, vmem, vmem],
        out_specs=vmem,
        scratch_shapes=[pltpu.VMEM((N, H + 2, W * C), jnp.float32)],
        cost_estimate=pl.CostEstimate(flops=flops, transcendentals=2 * C,
                                      bytes_accessed=bytes_accessed),
    )(x2d, w_slabs, bn_packed)
    return out2d.reshape(N, H, W, C)


def ref_forward(x_nhwc, params):
    # Pure-JAX reference matching PyTorch training-mode forward semantics.
    # NOTE: the reference KEEPS the conv bias; the kernel drops it, which must
    # (and does) give the same output because BN subtracts the batch mean.
    w1, b1, g1, be1, w2, b2, g2, be2 = params

    def conv(x, w, b):
        y = jax.lax.conv_general_dilated(
            x, w, window_strides=(1, 1), padding="SAME",
            dimension_numbers=("NHWC", "HWIO", "NHWC"))
        return y + b

    def bn_relu(y, g, be):
        mean = jnp.mean(y, axis=(0, 1, 2), keepdims=True)
        var = jnp.mean((y - mean) ** 2, axis=(0, 1, 2), keepdims=True)
        yn = (y - mean) / jnp.sqrt(var + EPS) * g + be
        return jnp.maximum(yn, 0.0)

    y = bn_relu(conv(x_nhwc, w1, b1), g1, be1)
    y = bn_relu(conv(y, w2, b2), g2, be2)
    return y + x_nhwc


if __name__ == "__main__":
    # PyTorch-style input shape: (N, C, H, W); channel=32 is the module default.
    N, C, H, W = 2, 32, 8, 8
    key = jax.random.PRNGKey(0)
    ks = jax.random.split(key, 10)

    x_nchw = jax.random.normal(ks[0], (N, C, H, W), jnp.float32)
    x_nhwc = jnp.transpose(x_nchw, (0, 2, 3, 1))

    fan_in = C * 3 * 3
    bound = 1.0 / jnp.sqrt(fan_in)
    # Conv2d params (HWIO layout; PyTorch would be OIHW [C, C, 3, 3]).
    w1 = jax.random.uniform(ks[1], (3, 3, C, C), jnp.float32, -bound, bound)
    b1 = jax.random.uniform(ks[2], (C,), jnp.float32, -bound, bound)
    w2 = jax.random.uniform(ks[3], (3, 3, C, C), jnp.float32, -bound, bound)
    b2 = jax.random.uniform(ks[4], (C,), jnp.float32, -bound, bound)
    # BatchNorm affine params (non-trivial to exercise scale/shift).
    g1 = 1.0 + 0.1 * jax.random.normal(ks[5], (C,), jnp.float32)
    be1 = 0.1 * jax.random.normal(ks[6], (C,), jnp.float32)
    g2 = 1.0 + 0.1 * jax.random.normal(ks[7], (C,), jnp.float32)
    be2 = 0.1 * jax.random.normal(ks[8], (C,), jnp.float32)

    params = (w1, b1, g1, be1, w2, b2, g2, be2)

    out_nhwc = jax.block_until_ready(jax.jit(residual_block)(x_nhwc, params))
    out_nchw = jnp.transpose(out_nhwc, (0, 3, 1, 2))  # back to PyTorch layout

    ref_nhwc = ref_forward(x_nhwc, params)
    assert out_nchw.shape == (N, C, H, W)
    assert jnp.allclose(out_nhwc, ref_nhwc, rtol=1e-4, atol=2e-4), (
        float(jnp.max(jnp.abs(out_nhwc - ref_nhwc))))

    print("KERNEL_OK")
</pallas_src>

<mosaic_0001>
module attributes {stable_mosaic.version = 11 : i64} {
  func.func @residual_block_kernel(%arg0: memref<16x256xf32, #tpu.memory_space<vmem>>, %arg1: memref<2x3x256x256xf32, #tpu.memory_space<vmem>>, %arg2: memref<4x32xf32, #tpu.memory_space<vmem>>, %arg3: memref<16x256xf32, #tpu.memory_space<vmem>>, %arg4: memref<2x10x256xf32, #tpu.memory_space<vmem>>) attributes {dimension_semantics = [], scalar_prefetch = 0 : i64, scratch_operands = 1 : i64, tpu.core_type = #tpu.core_type<tc>} {
    %cst = arith.constant 0.000000e+00 : f32
    %0 = vector.broadcast %cst : f32 to vector<2x1x256xf32>
    %c0 = arith.constant 0 : index
    %c0_0 = arith.constant 0 : index
    %c0_1 = arith.constant 0 : index
    %1 = vector.load %arg4[%c0, %c0_0, %c0_1] : memref<2x10x256xf32, #tpu.memory_space<vmem>>, vector<2x1x256xf32>
    tpu.vector_store %arg4[%c0, %c0_0, %c0_1], %0 {strides = array<i32>} : memref<2x10x256xf32, #tpu.memory_space<vmem>>, vector<2x1x256xf32>,
    %c0_2 = arith.constant 0 : index
    %c9 = arith.constant 9 : index
    %c0_3 = arith.constant 0 : index
    %2 = vector.load %arg4[%c0_2, %c9, %c0_3] : memref<2x10x256xf32, #tpu.memory_space<vmem>>, vector<2x1x256xf32>
    tpu.vector_store %arg4[%c0_2, %c9, %c0_3], %0 {strides = array<i32>} : memref<2x10x256xf32, #tpu.memory_space<vmem>>, vector<2x1x256xf32>,
    %c0_4 = arith.constant 0 : index
    %c0_5 = arith.constant 0 : index
    %3 = vector.load %arg0[%c0_4, %c0_5] : memref<16x256xf32, #tpu.memory_space<vmem>>, vector<16x256xf32>
    %4 = vector.shape_cast %3 : vector<16x256xf32> to vector<2x8x256xf32>
    %c0_6 = arith.constant 0 : index
    %c1 = arith.constant 1 : index
    %c0_7 = arith.constant 0 : index
    %5 = vector.load %arg4[%c0_6, %c1, %c0_7] : memref<2x10x256xf32, #tpu.memory_space<vmem>>, vector<2x8x256xf32>
    tpu.vector_store %arg4[%c0_6, %c1, %c0_7], %4 {strides = array<i32>} : memref<2x10x256xf32, #tpu.memory_space<vmem>>, vector<2x8x256xf32>,
    %c0_8 = arith.constant 0 : index
    %c0_9 = arith.constant 0 : index
    %c0_10 = arith.constant 0 : index
    %6 = vector.load %arg4[%c0_8, %c0_9, %c0_10] : memref<2x10x256xf32, #tpu.memory_space<vmem>>, vector<2x8x256xf32>
    %7 = vector.shape_cast %6 : vector<2x8x256xf32> to vector<16x256xf32>
    %c0_11 = arith.constant 0 : index
    %c0_12 = arith.constant 0 : index
    %c0_13 = arith.constant 0 : index
    %c0_14 = arith.constant 0 : index
    %8 = vector.load %arg1[%c0_11, %c0_12, %c0_13, %c0_14] : memref<2x3x256x256xf32, #tpu.memory_space<vmem>>, vector<1x1x256x256xf32>
    %9 = vector.shape_cast %8 : vector<1x1x256x256xf32> to vector<256x256xf32>
    %cst_15 = arith.constant dense<0.000000e+00> : vector<16x256xf32>
    %10 = tpu.matmul %7, %9, %cst_15 {dimension_numbers = #tpu.dot_dimension_numbers<[1], [0], [0], [1], [0, 0, 1, 1], [], []>} : vector<16x256xf32>, vector<256x256xf32>, vector<16x256xf32> -> vector<16x256xf32>
    %c0_16 = arith.constant 0 : index
    %c1_17 = arith.constant 1 : index
    %c0_18 = arith.constant 0 : index
    %11 = vector.load %arg4[%c0_16, %c1_17, %c0_18] : memref<2x10x256xf32, #tpu.memory_space<vmem>>, vector<2x8x256xf32>
    %12 = vector.shape_cast %11 : vector<2x8x256xf32> to vector<16x256xf32>
    %c0_19 = arith.constant 0 : index
    %c1_20 = arith.constant 1 : index
    %c0_21 = arith.constant 0 : index
    %c0_22 = arith.constant 0 : index
    %13 = vector.load %arg1[%c0_19, %c1_20, %c0_21, %c0_22] : memref<2x3x256x256xf32, #tpu.memory_space<vmem>>, vector<1x1x256x256xf32>
    %14 = vector.shape_cast %13 : vector<1x1x256x256xf32> to vector<256x256xf32>
    %cst_23 = arith.constant dense<0.000000e+00> : vector<16x256xf32>
    %15 = tpu.matmul %12, %14, %cst_23 {dimension_numbers = #tpu.dot_dimension_numbers<[1], [0], [0], [1], [0, 0, 1, 1], [], []>} : vector<16x256xf32>, vector<256x256xf32>, vector<16x256xf32> -> vector<16x256xf32>
    %16 = arith.addf %10, %15 : vector<16x256xf32>
    %c0_24 = arith.constant 0 : index
    %c2 = arith.constant 2 : index
    %c0_25 = arith.constant 0 : index
    %17 = vector.load %arg4[%c0_24, %c2, %c0_25] : memref<2x10x256xf32, #tpu.memory_space<vmem>>, vector<2x8x256xf32>
    %18 = vector.shape_cast %17 : vector<2x8x256xf32> to vector<16x256xf32>
    %c0_26 = arith.constant 0 : index
    %c2_27 = arith.constant 2 : index
    %c0_28 = arith.constant 0 : index
    %c0_29 = arith.constant 0 : index
    %19 = vector.load %arg1[%c0_26, %c2_27, %c0_28, %c0_29] : memref<2x3x256x256xf32, #tpu.memory_space<vmem>>, vector<1x1x256x256xf32>
    %20 = vector.shape_cast %19 : vector<1x1x256x256xf32> to vector<256x256xf32>
    %cst_30 = arith.constant dense<0.000000e+00> : vector<16x256xf32>
    %21 = tpu.matmul %18, %20, %cst_30 {dimension_numbers = #tpu.dot_dimension_numbers<[1], [0], [0], [1], [0, 0, 1, 1], [], []>} : vector<16x256xf32>, vector<256x256xf32>, vector<16x256xf32> -> vector<16x256xf32>
    %22 = arith.addf %16, %21 : vector<16x256xf32>
    %c0_31 = arith.constant 0 : index
    %c0_32 = arith.constant 0 : index
    %23 = vector.load %arg2[%c0_31, %c0_32] : memref<4x32xf32, #tpu.memory_space<vmem>>, vector<1x32xf32>
    %c1_33 = arith.constant 1 : index
    %c0_34 = arith.constant 0 : index
    %24 = vector.load %arg2[%c1_33, %c0_34] : memref<4x32xf32, #tpu.memory_space<vmem>>, vector<1x32xf32>
    %cst_35 = arith.constant dense<0.000000e+00> : vector<256xf32>
    %25 = vector.multi_reduction <add>, %22, %cst_35 [0] : vector<16x256xf32> to vector<256xf32>
    %26 = vector.shape_cast %25 : vector<256xf32> to vector<1x256xf32>
    %27 = arith.mulf %22, %22 : vector<16x256xf32>
    %cst_36 = arith.constant dense<0.000000e+00> : vector<256xf32>
    %28 = vector.multi_reduction <add>, %27, %cst_36 [0] : vector<16x256xf32> to vector<256xf32>
    %29 = vector.shape_cast %28 : vector<256xf32> to vector<1x256xf32>
    %30 = vector.extract_strided_slice %26 {offsets = [0, 0], sizes = [1, 32], strides = [1, 1]} : vector<1x256xf32> to vector<1x32xf32>
    %31 = vector.extract_strided_slice %29 {offsets = [0, 0], sizes = [1, 32], strides = [1, 1]} : vector<1x256xf32> to vector<1x32xf32>
    %32 = vector.extract_strided_slice %26 {offsets = [0, 32], sizes = [1, 32], strides = [1, 1]} : vector<1x256xf32> to vector<1x32xf32>
    %33 = arith.addf %30, %32 : vector<1x32xf32>
    %34 = vector.extract_strided_slice %29 {offsets = [0, 32], sizes = [1, 32], strides = [1, 1]} : vector<1x256xf32> to vector<1x32xf32>
    %35 = arith.addf %31, %34 : vector<1x32xf32>
    %36 = vector.extract_strided_slice %26 {offsets = [0, 64], sizes = [1, 32], strides = [1, 1]} : vector<1x256xf32> to vector<1x32xf32>
    %37 = arith.addf %33, %36 : vector<1x32xf32>
    %38 = vector.extract_strided_slice %29 {offsets = [0, 64], sizes = [1, 32], strides = [1, 1]} : vector<1x256xf32> to vector<1x32xf32>
    %39 = arith.addf %35, %38 : vector<1x32xf32>
    %40 = vector.extract_strided_slice %26 {offsets = [0, 96], sizes = [1, 32], strides = [1, 1]} : vector<1x256xf32> to vector<1x32xf32>
    %41 = arith.addf %37, %40 : vector<1x32xf32>
    %42 = vector.extract_strided_slice %29 {offsets = [0, 96], sizes = [1, 32], strides = [1, 1]} : vector<1x256xf32> to vector<1x32xf32>
    %43 = arith.addf %39, %42 : vector<1x32xf32>
    %44 = vector.extract_strided_slice %26 {offsets = [0, 128], sizes = [1, 32], strides = [1, 1]} : vector<1x256xf32> to vector<1x32xf32>
    %45 = arith.addf %41, %44 : vector<1x32xf32>
    %46 = vector.extract_strided_slice %29 {offsets = [0, 128], sizes = [1, 32], strides = [1, 1]} : vector<1x256xf32> to vector<1x32xf32>
    %47 = arith.addf %43, %46 : vector<1x32xf32>
    %48 = vector.extract_strided_slice %26 {offsets = [0, 160], sizes = [1, 32], strides = [1, 1]} : vector<1x256xf32> to vector<1x32xf32>
    %49 = arith.addf %45, %48 : vector<1x32xf32>
    %50 = vector.extract_strided_slice %29 {offsets = [0, 160], sizes = [1, 32], strides = [1, 1]} : vector<1x256xf32> to vector<1x32xf32>
    %51 = arith.addf %47, %50 : vector<1x32xf32>
    %52 = vector.extract_strided_slice %26 {offsets = [0, 192], sizes = [1, 32], strides = [1, 1]} : vector<1x256xf32> to vector<1x32xf32>
    %53 = arith.addf %49, %52 : vector<1x32xf32>
    %54 = vector.extract_strided_slice %29 {offsets = [0, 192], sizes = [1, 32], strides = [1, 1]} : vector<1x256xf32> to vector<1x32xf32>
    %55 = arith.addf %51, %54 : vector<1x32xf32>
    %56 = vector.extract_strided_slice %26 {offsets = [0, 224], sizes = [1, 32], strides = [1, 1]} : vector<1x256xf32> to vector<1x32xf32>
    %57 = arith.addf %53, %56 : vector<1x32xf32>
    %58 = vector.extract_strided_slice %29 {offsets = [0, 224], sizes = [1, 32], strides = [1, 1]} : vector<1x256xf32> to vector<1x32xf32>
    %59 = arith.addf %55, %58 : vector<1x32xf32>
    %cst_37 = arith.constant 7.812500e-03 : f32
    %60 = vector.broadcast %cst_37 : f32 to vector<1x32xf32>
    %61 = arith.mulf %57, %60 : vector<1x32xf32>
    %cst_38 = arith.constant 7.812500e-03 : f32
    %62 = vector.broadcast %cst_38 : f32 to vector<1x32xf32>
    %63 = arith.mulf %59, %62 : vector<1x32xf32>
    %64 = arith.mulf %61, %61 : vector<1x32xf32>
    %65 = arith.subf %63, %64 : vector<1x32xf32>
    %cst_39 = arith.constant 0.000000e+00 : f32
    %66 = vector.broadcast %cst_39 : f32 to vector<1x32xf32>
    %67 = arith.maximumf %65, %66 : vector<1x32xf32>
    %cst_40 = arith.constant 9.99999974E-6 : f32
    %68 = vector.broadcast %cst_40 : f32 to vector<1x32xf32>
    %69 = arith.addf %67, %68 : vector<1x32xf32>
    %70 = math.rsqrt %69 : vector<1x32xf32>
    %71 = arith.mulf %70, %23 : vector<1x32xf32>
    %72 = arith.mulf %61, %71 : vector<1x32xf32>
    %73 = arith.subf %24, %72 : vector<1x32xf32>
    %74 = tpu.concatenate %71, %71, %71, %71, %71, %71, %71, %71 in 1 : vector<1x32xf32>, vector<1x32xf32>, vector<1x32xf32>, vector<1x32xf32>, vector<1x32xf32>, vector<1x32xf32>, vector<1x32xf32>, vector<1x32xf32> -> vector<1x256xf32>
    %75 = tpu.concatenate %73, %73, %73, %73, %73, %73, %73, %73 in 1 : vector<1x32xf32>, vector<1x32xf32>, vector<1x32xf32>, vector<1x32xf32>, vector<1x32xf32>, vector<1x32xf32>, vector<1x32xf32>, vector<1x32xf32> -> vector<1x256xf32>
    %76 = vector.broadcast %74 : vector<1x256xf32> to vector<16x256xf32>
    %77 = arith.mulf %22, %76 : vector<16x256xf32>
    %78 = vector.broadcast %75 : vector<1x256xf32> to vector<16x256xf32>
    %79 = arith.addf %77, %78 : vector<16x256xf32>
    %cst_41 = arith.constant 0.000000e+00 : f32
    %80 = vector.broadcast %cst_41 : f32 to vector<16x256xf32>
    %81 = arith.maximumf %79, %80 : vector<16x256xf32>
    %82 = vector.shape_cast %81 : vector<16x256xf32> to vector<2x8x256xf32>
    %c0_42 = arith.constant 0 : index
    %c1_43 = arith.constant 1 : index
    %c0_44 = arith.constant 0 : index
    %83 = vector.load %arg4[%c0_42, %c1_43, %c0_44] : memref<2x10x256xf32, #tpu.memory_space<vmem>>, vector<2x8x256xf32>
    tpu.vector_store %arg4[%c0_42, %c1_43, %c0_44], %82 {strides = array<i32>} : memref<2x10x256xf32, #tpu.memory_space<vmem>>, vector<2x8x256xf32>,
    %c0_45 = arith.constant 0 : index
    %c0_46 = arith.constant 0 : index
    %c0_47 = arith.constant 0 : index
    %84 = vector.load %arg4[%c0_45, %c0_46, %c0_47] : memref<2x10x256xf32, #tpu.memory_space<vmem>>, vector<2x8x256xf32>
    %85 = vector.shape_cast %84 : vector<2x8x256xf32> to vector<16x256xf32>
    %c1_48 = arith.constant 1 : index
    %c0_49 = arith.constant 0 : index
    %c0_50 = arith.constant 0 : index
    %c0_51 = arith.constant 0 : index
    %86 = vector.load %arg1[%c1_48, %c0_49, %c0_50, %c0_51] : memref<2x3x256x256xf32, #tpu.memory_space<vmem>>, vector<1x1x256x256xf32>
    %87 = vector.shape_cast %86 : vector<1x1x256x256xf32> to vector<256x256xf32>
    %cst_52 = arith.constant dense<0.000000e+00> : vector<16x256xf32>
    %88 = tpu.matmul %85, %87, %cst_52 {dimension_numbers = #tpu.dot_dimension_numbers<[1], [0], [0], [1], [0, 0, 1, 1], [], []>} : vector<16x256xf32>, vector<256x256xf32>, vector<16x256xf32> -> vector<16x256xf32>
    %c0_53 = arith.constant 0 : index
    %c1_54 = arith.constant 1 : index
    %c0_55 = arith.constant 0 : index
    %89 = vector.load %arg4[%c0_53, %c1_54, %c0_55] : memref<2x10x256xf32, #tpu.memory_space<vmem>>, vector<2x8x256xf32>
    %90 = vector.shape_cast %89 : vector<2x8x256xf32> to vector<16x256xf32>
    %c1_56 = arith.constant 1 : index
    %c1_57 = arith.constant 1 : index
    %c0_58 = arith.constant 0 : index
    %c0_59 = arith.constant 0 : index
    %91 = vector.load %arg1[%c1_56, %c1_57, %c0_58, %c0_59] : memref<2x3x256x256xf32, #tpu.memory_space<vmem>>, vector<1x1x256x256xf32>
    %92 = vector.shape_cast %91 : vector<1x1x256x256xf32> to vector<256x256xf32>
    %cst_60 = arith.constant dense<0.000000e+00> : vector<16x256xf32>
    %93 = tpu.matmul %90, %92, %cst_60 {dimension_numbers = #tpu.dot_dimension_numbers<[1], [0], [0], [1], [0, 0, 1, 1], [], []>} : vector<16x256xf32>, vector<256x256xf32>, vector<16x256xf32> -> vector<16x256xf32>
    %94 = arith.addf %88, %93 : vector<16x256xf32>
    %c0_61 = arith.constant 0 : index
    %c2_62 = arith.constant 2 : index
    %c0_63 = arith.constant 0 : index
    %95 = vector.load %arg4[%c0_61, %c2_62, %c0_63] : memref<2x10x256xf32, #tpu.memory_space<vmem>>, vector<2x8x256xf32>
    %96 = vector.shape_cast %95 : vector<2x8x256xf32> to vector<16x256xf32>
    %c1_64 = arith.constant 1 : index
    %c2_65 = arith.constant 2 : index
    %c0_66 = arith.constant 0 : index
    %c0_67 = arith.constant 0 : index
    %97 = vector.load %arg1[%c1_64, %c2_65, %c0_66, %c0_67] : memref<2x3x256x256xf32, #tpu.memory_space<vmem>>, vector<1x1x256x256xf32>
    %98 = vector.shape_cast %97 : vector<1x1x256x256xf32> to vector<256x256xf32>
    %cst_68 = arith.constant dense<0.000000e+00> : vector<16x256xf32>
    %99 = tpu.matmul %96, %98, %cst_68 {dimension_numbers = #tpu.dot_dimension_numbers<[1], [0], [0], [1], [0, 0, 1, 1], [], []>} : vector<16x256xf32>, vector<256x256xf32>, vector<16x256xf32> -> vector<16x256xf32>
    %100 = arith.addf %94, %99 : vector<16x256xf32>
    %c2_69 = arith.constant 2 : index
    %c0_70 = arith.constant 0 : index
    %101 = vector.load %arg2[%c2_69, %c0_70] : memref<4x32xf32, #tpu.memory_space<vmem>>, vector<1x32xf32>
    %c3 = arith.constant 3 : index
    %c0_71 = arith.constant 0 : index
    %102 = vector.load %arg2[%c3, %c0_71] : memref<4x32xf32, #tpu.memory_space<vmem>>, vector<1x32xf32>
    %cst_72 = arith.constant dense<0.000000e+00> : vector<256xf32>
    %103 = vector.multi_reduction <add>, %100, %cst_72 [0] : vector<16x256xf32> to vector<256xf32>
    %104 = vector.shape_cast %103 : vector<256xf32> to vector<1x256xf32>
    %105 = arith.mulf %100, %100 : vector<16x256xf32>
    %cst_73 = arith.constant dense<0.000000e+00> : vector<256xf32>
    %106 = vector.multi_reduction <add>, %105, %cst_73 [0] : vector<16x256xf32> to vector<256xf32>
    %107 = vector.shape_cast %106 : vector<256xf32> to vector<1x256xf32>
    %108 = vector.extract_strided_slice %104 {offsets = [0, 0], sizes = [1, 32], strides = [1, 1]} : vector<1x256xf32> to vector<1x32xf32>
    %109 = vector.extract_strided_slice %107 {offsets = [0, 0], sizes = [1, 32], strides = [1, 1]} : vector<1x256xf32> to vector<1x32xf32>
    %110 = vector.extract_strided_slice %104 {offsets = [0, 32], sizes = [1, 32], strides = [1, 1]} : vector<1x256xf32> to vector<1x32xf32>
    %111 = arith.addf %108, %110 : vector<1x32xf32>
    %112 = vector.extract_strided_slice %107 {offsets = [0, 32], sizes = [1, 32], strides = [1, 1]} : vector<1x256xf32> to vector<1x32xf32>
    %113 = arith.addf %109, %112 : vector<1x32xf32>
    %114 = vector.extract_strided_slice %104 {offsets = [0, 64], sizes = [1, 32], strides = [1, 1]} : vector<1x256xf32> to vector<1x32xf32>
    %115 = arith.addf %111, %114 : vector<1x32xf32>
    %116 = vector.extract_strided_slice %107 {offsets = [0, 64], sizes = [1, 32], strides = [1, 1]} : vector<1x256xf32> to vector<1x32xf32>
    %117 = arith.addf %113, %116 : vector<1x32xf32>
    %118 = vector.extract_strided_slice %104 {offsets = [0, 96], sizes = [1, 32], strides = [1, 1]} : vector<1x256xf32> to vector<1x32xf32>
    %119 = arith.addf %115, %118 : vector<1x32xf32>
    %120 = vector.extract_strided_slice %107 {offsets = [0, 96], sizes = [1, 32], strides = [1, 1]} : vector<1x256xf32> to vector<1x32xf32>
    %121 = arith.addf %117, %120 : vector<1x32xf32>
    %122 = vector.extract_strided_slice %104 {offsets = [0, 128], sizes = [1, 32], strides = [1, 1]} : vector<1x256xf32> to vector<1x32xf32>
    %123 = arith.addf %119, %122 : vector<1x32xf32>
    %124 = vector.extract_strided_slice %107 {offsets = [0, 128], sizes = [1, 32], strides = [1, 1]} : vector<1x256xf32> to vector<1x32xf32>
    %125 = arith.addf %121, %124 : vector<1x32xf32>
    %126 = vector.extract_strided_slice %104 {offsets = [0, 160], sizes = [1, 32], strides = [1, 1]} : vector<1x256xf32> to vector<1x32xf32>
    %127 = arith.addf %123, %126 : vector<1x32xf32>
    %128 = vector.extract_strided_slice %107 {offsets = [0, 160], sizes = [1, 32], strides = [1, 1]} : vector<1x256xf32> to vector<1x32xf32>
    %129 = arith.addf %125, %128 : vector<1x32xf32>
    %130 = vector.extract_strided_slice %104 {offsets = [0, 192], sizes = [1, 32], strides = [1, 1]} : vector<1x256xf32> to vector<1x32xf32>
    %131 = arith.addf %127, %130 : vector<1x32xf32>
    %132 = vector.extract_strided_slice %107 {offsets = [0, 192], sizes = [1, 32], strides = [1, 1]} : vector<1x256xf32> to vector<1x32xf32>
    %133 = arith.addf %129, %132 : vector<1x32xf32>
    %134 = vector.extract_strided_slice %104 {offsets = [0, 224], sizes = [1, 32], strides = [1, 1]} : vector<1x256xf32> to vector<1x32xf32>
    %135 = arith.addf %131, %134 : vector<1x32xf32>
    %136 = vector.extract_strided_slice %107 {offsets = [0, 224], sizes = [1, 32], strides = [1, 1]} : vector<1x256xf32> to vector<1x32xf32>
    %137 = arith.addf %133, %136 : vector<1x32xf32>
    %cst_74 = arith.constant 7.812500e-03 : f32
    %138 = vector.broadcast %cst_74 : f32 to vector<1x32xf32>
    %139 = arith.mulf %135, %138 : vector<1x32xf32>
    %cst_75 = arith.constant 7.812500e-03 : f32
    %140 = vector.broadcast %cst_75 : f32 to vector<1x32xf32>
    %141 = arith.mulf %137, %140 : vector<1x32xf32>
    %142 = arith.mulf %139, %139 : vector<1x32xf32>
    %143 = arith.subf %141, %142 : vector<1x32xf32>
    %cst_76 = arith.constant 0.000000e+00 : f32
    %144 = vector.broadcast %cst_76 : f32 to vector<1x32xf32>
    %145 = arith.maximumf %143, %144 : vector<1x32xf32>
    %cst_77 = arith.constant 9.99999974E-6 : f32
    %146 = vector.broadcast %cst_77 : f32 to vector<1x32xf32>
    %147 = arith.addf %145, %146 : vector<1x32xf32>
    %148 = math.rsqrt %147 : vector<1x32xf32>
    %149 = arith.mulf %148, %101 : vector<1x32xf32>
    %150 = arith.mulf %139, %149 : vector<1x32xf32>
    %151 = arith.subf %102, %150 : vector<1x32xf32>
    %152 = tpu.concatenate %149, %149, %149, %149, %149, %149, %149, %149 in 1 : vector<1x32xf32>, vector<1x32xf32>, vector<1x32xf32>, vector<1x32xf32>, vector<1x32xf32>, vector<1x32xf32>, vector<1x32xf32>, vector<1x32xf32> -> vector<1x256xf32>
    %153 = tpu.concatenate %151, %151, %151, %151, %151, %151, %151, %151 in 1 : vector<1x32xf32>, vector<1x32xf32>, vector<1x32xf32>, vector<1x32xf32>, vector<1x32xf32>, vector<1x32xf32>, vector<1x32xf32>, vector<1x32xf32> -> vector<1x256xf32>
    %154 = vector.broadcast %152 : vector<1x256xf32> to vector<16x256xf32>
    %155 = arith.mulf %100, %154 : vector<16x256xf32>
    %156 = vector.broadcast %153 : vector<1x256xf32> to vector<16x256xf32>
    %157 = arith.addf %155, %156 : vector<16x256xf32>
    %cst_78 = arith.constant 0.000000e+00 : f32
    %158 = vector.broadcast %cst_78 : f32 to vector<16x256xf32>
    %159 = arith.maximumf %157, %158 : vector<16x256xf32>
    %160 = arith.addf %159, %3 : vector<16x256xf32>
    %c0_79 = arith.constant 0 : index
    %c0_80 = arith.constant 0 : index
    %161 = vector.load %arg3[%c0_79, %c0_80] : memref<16x256xf32, #tpu.memory_space<vmem>>, vector<16x256xf32>
    tpu.vector_store %arg3[%c0_79, %c0_80], %160 {strides = array<i32>} : memref<16x256xf32, #tpu.memory_space<vmem>>, vector<16x256xf32>,
    return
  }
}

</mosaic_0001>

<llo_original>
// kernel: residual_block.1
$region0: #{residual_block.1}
  #allocation0 [shape = 'u32[]', space=smem, size = 0x4, offset = 0x4, fixed_abs, tag = 'smem constant byte address 0x4 - core index']
  #allocation1 [shape = 'u32[144,128]{1,0:T(1,128)}', space=vmem, size = 0x12000, scoped, tag = 'internal scratch']
  #allocation2 [shape = 'f32[2,10,256]{2,1,0:T(8,128)}', space=vmem, size = 0x8000, scoped, tag = 'scratch operand']
  %s0 = inlined_call_operand.vmem [shape: f32[16,256], index: 0, kind: input, shape index: {}]
  %s1 = inlined_call_operand.vmem [shape: f32[2,3,256,256], index: 1, kind: input, shape index: {}]
  %s2 = inlined_call_operand.vmem [shape: f32[4,32], index: 2, kind: input, shape index: {}]
  %s3 = inlined_call_operand.vmem [shape: f32[16,256], index: 3, kind: output, shape index: {}]
  %s4 = sld [smem:[#allocation0]]
  $region22: #{residual_block.1} parent=0
    _
  %s6 = ssub.s32 1, %s4
  %s7 = scalar_select 0, %s6, %s4
  // Predicated region
  $region2: #{residual_block.1} parent=0 // pred_check
    _
  $region3: #{residual_block.1} parent=0 // pred_check_branch
    %9 = sbr.rel (0) target = $region5
  $region4: #{residual_block.1} parent=0 // pred_region
    _
  $region5: #{residual_block.1} parent=0 // pred_fallthru
    _
  // Predicated region
  $region6: #{residual_block.1} parent=0 // pred_check
    _
  $region7: #{residual_block.1} parent=0 // pred_check_branch
    %11 = sbr.rel (0) target = $region9
  $region8: #{residual_block.1} parent=0 // pred_region
    _
  $region9: #{residual_block.1} parent=0 // pred_fallthru
    _
  // Predicated region
  $region10: #{residual_block.1} parent=0 // pred_check
    _
  $region11: #{residual_block.1} parent=0 // pred_check_branch
    %13 = sbr.rel (0) target = $region13
  $region12: #{residual_block.1} parent=0 // pred_region
    _
  $region13: #{residual_block.1} parent=0 // pred_fallthru
    _
  %v14 = vlaneseq
  %vm15 = vcmp.ge.s32.totalorder %v14, 0
  %vm16 = vcmp.lt.s32.totalorder %v14, 256
  %vm17 = vmand %vm15, %vm16
  %18 = vst.msk [vmem:[#allocation2] ss:$8 sm:$0x3] %vm17, 0.0
  %19 = vst.msk [vmem:[#allocation2] ss:$8 sm:$0x0] %vm17, 0.0
  %s20 = scalar_lea.vmem [#allocation2], 32
  %21 = vst.msk [vmem:[%s20] ss:$8 sm:$0x3] %vm17, 0.0
  %22 = vst.msk [vmem:[%s20] ss:$8 sm:$0x0] %vm17, 0.0
  %s23 = scalar_lea.vmem [#allocation2], 17
  %24 = vst.msk [vmem:[%s23] ss:$8 sm:$0x3] %vm17, 0.0
  %25 = vst.msk [vmem:[%s23] ss:$8 sm:$0x0] %vm17, 0.0
  %s26 = scalar_lea.vmem [#allocation2], 49
  %27 = vst.msk [vmem:[%s26] ss:$8 sm:$0x3] %vm17, 0.0
  %28 = vst.msk [vmem:[%s26] ss:$8 sm:$0x0] %vm17, 0.0
  %v29 = vld [vmem:[%s0] sm:$0xff]
  %v30 = vld [vmem:[%s0 + $0x8] sm:$0xff]
  %v31 = vld [vmem:[%s0 + $0x10] sm:$0xff]
  %v32 = vld [vmem:[%s0 + $0x18] sm:$0xff]
  %v37 = vrot.slane %v29, 7
  %v38 = vrot.slane %v30, 7
  %v39 = vrot.slane %v31, 7
  %v40 = vrot.slane %v32, 7
  %45 = vst [vmem:[#allocation2] sm:$0xfe] %v37
  %46 = vst [vmem:[#allocation2 + $0x8] sm:$0xfe] %v38
  %47 = vst [vmem:[#allocation2 + $0x10] sm:$0x1] %v37
  %48 = vst [vmem:[#allocation2 + $0x18] sm:$0x1] %v38
  %49 = vst [vmem:[#allocation2 + $0x20] sm:$0xfe] %v39
  %50 = vst [vmem:[#allocation2 + $0x28] sm:$0xfe] %v40
  %51 = vst [vmem:[#allocation2 + $0x30] sm:$0x1] %v39
  %52 = vst [vmem:[#allocation2 + $0x38] sm:$0x1] %v40
  %v53 = vld [vmem:[#allocation2] sm:$0xff]
  %v54 = vld [vmem:[#allocation2 + $0x8] sm:$0xff]
  %v55 = vld [vmem:[#allocation2 + $0x20] sm:$0xff]
  %v56 = vld [vmem:[#allocation2 + $0x28] sm:$0xff]
  %v57 = vld [vmem:[%s1] sm:$0xff]
  %v58 = vld [vmem:[%s1 + $0x8] sm:$0xff]
  %v59 = vld [vmem:[%s1 + $0x10] sm:$0xff]
  %v60 = vld [vmem:[%s1 + $0x18] sm:$0xff]
  %v61 = vld [vmem:[%s1 + $0x20] sm:$0xff]
  %v62 = vld [vmem:[%s1 + $0x28] sm:$0xff]
  %v63 = vld [vmem:[%s1 + $0x30] sm:$0xff]
  %v64 = vld [vmem:[%s1 + $0x38] sm:$0xff]
  %v65 = vld [vmem:[%s1 + $0x40] sm:$0xff]
  %v66 = vld [vmem:[%s1 + $0x48] sm:$0xff]
  %v67 = vld [vmem:[%s1 + $0x50] sm:$0xff]
  %v68 = vld [vmem:[%s1 + $0x58] sm:$0xff]
  %v69 = vld [vmem:[%s1 + $0x60] sm:$0xff]
  %v70 = vld [vmem:[%s1 + $0x68] sm:$0xff]
  %v71 = vld [vmem:[%s1 + $0x70] sm:$0xff]
  %v72 = vld [vmem:[%s1 + $0x78] sm:$0xff]
  %v73 = vld [vmem:[%s1 + $0x80] sm:$0xff]
  %v74 = vld [vmem:[%s1 + $0x88] sm:$0xff]
  %v75 = vld [vmem:[%s1 + $0x90] sm:$0xff]
  %v76 = vld [vmem:[%s1 + $0x98] sm:$0xff]
  %v77 = vld [vmem:[%s1 + $0xa0] sm:$0xff]
  %v78 = vld [vmem:[%s1 + $0xa8] sm:$0xff]
  %v79 = vld [vmem:[%s1 + $0xb0] sm:$0xff]
  %v80 = vld [vmem:[%s1 + $0xb8] sm:$0xff]
  %v81 = vld [vmem:[%s1 + $0xc0] sm:$0xff]
  %v82 = vld [vmem:[%s1 + $0xc8] sm:$0xff]
  %v83 = vld [vmem:[%s1 + $0xd0] sm:$0xff]
  %v84 = vld [vmem:[%s1 + $0xd8] sm:$0xff]
  %v85 = vld [vmem:[%s1 + $0xe0] sm:$0xff]
  %v86 = vld [vmem:[%s1 + $0xe8] sm:$0xff]
  %v87 = vld [vmem:[%s1 + $0xf0] sm:$0xff]
  %v88 = vld [vmem:[%s1 + $0xf8] sm:$0xff]
  %v89 = vld [vmem:[%s1 + $0x100] sm:$0xff]
  %v90 = vld [vmem:[%s1 + $0x108] sm:$0xff]
  %v91 = vld [vmem:[%s1 + $0x110] sm:$0xff]
  %v92 = vld [vmem:[%s1 + $0x118] sm:$0xff]
  %v93 = vld [vmem:[%s1 + $0x120] sm:$0xff]
  %v94 = vld [vmem:[%s1 + $0x128] sm:$0xff]
  %v95 = vld [vmem:[%s1 + $0x130] sm:$0xff]
  %v96 = vld [vmem:[%s1 + $0x138] sm:$0xff]
  %v97 = vld [vmem:[%s1 + $0x140] sm:$0xff]
  %v98 = vld [vmem:[%s1 + $0x148] sm:$0xff]
  %v99 = vld [vmem:[%s1 + $0x150] sm:$0xff]
  %v100 = vld [vmem:[%s1 + $0x158] sm:$0xff]
  %v101 = vld [vmem:[%s1 + $0x160] sm:$0xff]
  %v102 = vld [vmem:[%s1 + $0x168] sm:$0xff]
  %v103 = vld [vmem:[%s1 + $0x170] sm:$0xff]
  %v104 = vld [vmem:[%s1 + $0x178] sm:$0xff]
  %v105 = vld [vmem:[%s1 + $0x180] sm:$0xff]
  %v106 = vld [vmem:[%s1 + $0x188] sm:$0xff]
  %v107 = vld [vmem:[%s1 + $0x190] sm:$0xff]
  %v108 = vld [vmem:[%s1 + $0x198] sm:$0xff]
  %v109 = vld [vmem:[%s1 + $0x1a0] sm:$0xff]
  %v110 = vld [vmem:[%s1 + $0x1a8] sm:$0xff]
  %v111 = vld [vmem:[%s1 + $0x1b0] sm:$0xff]
  %v112 = vld [vmem:[%s1 + $0x1b8] sm:$0xff]
  %v113 = vld [vmem:[%s1 + $0x1c0] sm:$0xff]
  %v114 = vld [vmem:[%s1 + $0x1c8] sm:$0xff]
  %v115 = vld [vmem:[%s1 + $0x1d0] sm:$0xff]
  %v116 = vld [vmem:[%s1 + $0x1d8] sm:$0xff]
  %v117 = vld [vmem:[%s1 + $0x1e0] sm:$0xff]
  %v118 = vld [vmem:[%s1 + $0x1e8] sm:$0xff]
  %v119 = vld [vmem:[%s1 + $0x1f0] sm:$0xff]
  %v120 = vld [vmem:[%s1 + $0x1f8] sm:$0xff]
  %v121 = vld [vmem:[#allocation2] sm:$0xfe]
  %v122 = vld [vmem:[#allocation2 + $0x8] sm:$0xfe]
  %v123 = vld [vmem:[#allocation2 + $0x10] sm:$0x1]
  %v124 = vld [vmem:[#allocation2 + $0x18] sm:$0x1]
  %v125 = vld [vmem:[#allocation2 + $0x20] sm:$0xfe]
  %v126 = vld [vmem:[#allocation2 + $0x28] sm:$0xfe]
  %v127 = vld [vmem:[#allocation2 + $0x30] sm:$0x1]
  %v128 = vld [vmem:[#allocation2 + $0x38] sm:$0x1]
  %vm137 = vcmask 1046528
  %v138 = vrot.slane %v121, 1
  %v139 = vrot.slane %v123, 1
  %v140 = vsel %vm137, %v138, %v139
  %v141 = vrot.slane %v122, 1
  %v142 = vrot.slane %v124, 1
  %v143 = vsel %vm137, %v141, %v142
  %v144 = vrot.slane %v125, 1
  %v145 = vrot.slane %v127, 1
  %v146 = vsel %vm137, %v144, %v145
  %v147 = vrot.slane %v126, 1
  %v148 = vrot.slane %v128, 1
  %v149 = vsel %vm137, %v147, %v148
  %s154 = scalar_lea.vmem %s1, 512
  %v155 = vld [vmem:[%s154] sm:$0xff]
  %v156 = vld [vmem:[%s154 + $0x8] sm:$0xff]
  %v157 = vld [vmem:[%s154 + $0x10] sm:$0xff]
  %v158 = vld [vmem:[%s154 + $0x18] sm:$0xff]
  %v159 = vld [vmem:[%s154 + $0x20] sm:$0xff]
  %v160 = vld [vmem:[%s154 + $0x28] sm:$0xff]
  %v161 = vld [vmem:[%s154 + $0x30] sm:$0xff]
  %v162 = vld [vmem:[%s154 + $0x38] sm:$0xff]
  %v163 = vld [vmem:[%s154 + $0x40] sm:$0xff]
  %v164 = vld [vmem:[%s154 + $0x48] sm:$0xff]
  %v165 = vld [vmem:[%s154 + $0x50] sm:$0xff]
  %v166 = vld [vmem:[%s154 + $0x58] sm:$0xff]
  %v167 = vld [vmem:[%s154 + $0x60] sm:$0xff]
  %v168 = vld [vmem:[%s154 + $0x68] sm:$0xff]
  %v169 = vld [vmem:[%s154 + $0x70] sm:$0xff]
  %v170 = vld [vmem:[%s154 + $0x78] sm:$0xff]
  %v171 = vld [vmem:[%s154 + $0x80] sm:$0xff]
  %v172 = vld [vmem:[%s154 + $0x88] sm:$0xff]
  %v173 = vld [vmem:[%s154 + $0x90] sm:$0xff]
  %v174 = vld [vmem:[%s154 + $0x98] sm:$0xff]
  %v175 = vld [vmem:[%s154 + $0xa0] sm:$0xff]
  %v176 = vld [vmem:[%s154 + $0xa8] sm:$0xff]
  %v177 = vld [vmem:[%s154 + $0xb0] sm:$0xff]
  %v178 = vld [vmem:[%s154 + $0xb8] sm:$0xff]
  %v179 = vld [vmem:[%s154 + $0xc0] sm:$0xff]
  %v180 = vld [vmem:[%s154 + $0xc8] sm:$0xff]
  %v181 = vld [vmem:[%s154 + $0xd0] sm:$0xff]
  %v182 = vld [vmem:[%s154 + $0xd8] sm:$0xff]
  %v183 = vld [vmem:[%s154 + $0xe0] sm:$0xff]
  %v184 = vld [vmem:[%s154 + $0xe8] sm:$0xff]
  %v185 = vld [vmem:[%s154 + $0xf0] sm:$0xff]
  %v186 = vld [vmem:[%s154 + $0xf8] sm:$0xff]
  %v187 = vld [vmem:[%s154 + $0x100] sm:$0xff]
  %v188 = vld [vmem:[%s154 + $0x108] sm:$0xff]
  %v189 = vld [vmem:[%s154 + $0x110] sm:$0xff]
  %v190 = vld [vmem:[%s154 + $0x118] sm:$0xff]
  %v191 = vld [vmem:[%s154 + $0x120] sm:$0xff]
  %v192 = vld [vmem:[%s154 + $0x128] sm:$0xff]
  %v193 = vld [vmem:[%s154 + $0x130] sm:$0xff]
  %v194 = vld [vmem:[%s154 + $0x138] sm:$0xff]
  %v195 = vld [vmem:[%s154 + $0x140] sm:$0xff]
  %v196 = vld [vmem:[%s154 + $0x148] sm:$0xff]
  %v197 = vld [vmem:[%s154 + $0x150] sm:$0xff]
  %v198 = vld [vmem:[%s154 + $0x158] sm:$0xff]
  %v199 = vld [vmem:[%s154 + $0x160] sm:$0xff]
  %v200 = vld [vmem:[%s154 + $0x168] sm:$0xff]
  %v201 = vld [vmem:[%s154 + $0x170] sm:$0xff]
  %v202 = vld [vmem:[%s154 + $0x178] sm:$0xff]
  %v203 = vld [vmem:[%s154 + $0x180] sm:$0xff]
  %v204 = vld [vmem:[%s154 + $0x188] sm:$0xff]
  %v205 = vld [vmem:[%s154 + $0x190] sm:$0xff]
  %v206 = vld [vmem:[%s154 + $0x198] sm:$0xff]
  %v207 = vld [vmem:[%s154 + $0x1a0] sm:$0xff]
  %v208 = vld [vmem:[%s154 + $0x1a8] sm:$0xff]
  %v209 = vld [vmem:[%s154 + $0x1b0] sm:$0xff]
  %v210 = vld [vmem:[%s154 + $0x1b8] sm:$0xff]
  %v211 = vld [vmem:[%s154 + $0x1c0] sm:$0xff]
  %v212 = vld [vmem:[%s154 + $0x1c8] sm:$0xff]
  %v213 = vld [vmem:[%s154 + $0x1d0] sm:$0xff]
  %v214 = vld [vmem:[%s154 + $0x1d8] sm:$0xff]
  %v215 = vld [vmem:[%s154 + $0x1e0] sm:$0xff]
  %v216 = vld [vmem:[%s154 + $0x1e8] sm:$0xff]
  %v217 = vld [vmem:[%s154 + $0x1f0] sm:$0xff]
  %v218 = vld [vmem:[%s154 + $0x1f8] sm:$0xff]
  %219 = vmatprep.subr.mxu0 %v156
  %220 = vmatpush1.msra.mxu0 %v155
  %221 = vmatprep.subr.mxu0 %v158
  %222 = vmatpush1.msra.mxu0 %v157
  %223 = vmatprep.subr.mxu0 %v160
  %224 = vmatpush1.msra.mxu0 %v159
  %225 = vmatprep.subr.mxu0 %v162
  %226 = vmatpush1.msra.mxu0 %v161
  %227 = vmatprep.subr.mxu0 %v164
  %228 = vmatpush1.msra.mxu0 %v163
  %229 = vmatprep.subr.mxu0 %v166
  %230 = vmatpush1.msra.mxu0 %v165
  %231 = vmatprep.subr.mxu0 %v168
  %232 = vmatpush1.msra.mxu0 %v167
  %233 = vmatprep.subr.mxu0 %v170
  %234 = vmatpush1.msra.mxu0 %v169
  %235 = vmatprep.subr.mxu0 %v172
  %236 = vmatpush1.msra.mxu0 %v171
  %237 = vmatprep.subr.mxu0 %v174
  %238 = vmatpush1.msra.mxu0 %v173
  %239 = vmatprep.subr.mxu0 %v176
  %240 = vmatpush1.msra.mxu0 %v175
  %241 = vmatprep.subr.mxu0 %v178
  %242 = vmatpush1.msra.mxu0 %v177
  %243 = vmatprep.subr.mxu0 %v180
  %244 = vmatpush1.msra.mxu0 %v179
  %245 = vmatprep.subr.mxu0 %v182
  %246 = vmatpush1.msra.mxu0 %v181
  %247 = vmatprep.subr.mxu0 %v184
  %248 = vmatpush1.msra.mxu0 %v183
  %249 = vmatprep.subr.mxu0 %v186
  %250 = vmatpush1.msra.mxu0 %v185
  %251 = vmatprep.subr.mxu0 %v188
  %252 = vmatpush1.msra.mxu0 %v187
  %253 = vmatprep.subr.mxu0 %v190
  %254 = vmatpush1.msra.mxu0 %v189
  %255 = vmatprep.subr.mxu0 %v192
  %256 = vmatpush1.msra.mxu0 %v191
  %257 = vmatprep.subr.mxu0 %v194
  %258 = vmatpush1.msra.mxu0 %v193
  %259 = vmatprep.subr.mxu0 %v196
  %260 = vmatpush1.msra.mxu0 %v195
  %261 = vmatprep.subr.mxu0 %v198
  %262 = vmatpush1.msra.mxu0 %v197
  %263 = vmatprep.subr.mxu0 %v200
  %264 = vmatpush1.msra.mxu0 %v199
  %265 = vmatprep.subr.mxu0 %v202
  %266 = vmatpush1.msra.mxu0 %v201
  %267 = vmatprep.subr.mxu0 %v204
  %268 = vmatpush1.msra.mxu0 %v203
  %269 = vmatprep.subr.mxu0 %v206
  %270 = vmatpush1.msra.mxu0 %v205
  %271 = vmatprep.subr.mxu0 %v208
  %272 = vmatpush1.msra.mxu0 %v207
  %273 = vmatprep.subr.mxu0 %v210
  %274 = vmatpush1.msra.mxu0 %v209
  %275 = vmatprep.subr.mxu0 %v212
  %276 = vmatpush1.msra.mxu0 %v211
  %277 = vmatprep.subr.mxu0 %v214
  %278 = vmatpush1.msra.mxu0 %v213
  %279 = vmatprep.subr.mxu0 %v216
  %280 = vmatpush1.msra.mxu0 %v215
  %281 = vmatprep.subr.mxu0 %v218
  %282 = vmatpush1.msra.mxu0 %v217
  %283 = vmatprep.mubr.f32.mxu0 %v143
  %284 = vmatmul.mubr.f32.gmra.mrb[0].mxu0 %v140
  %v285 = vpop.f32.mrb[0].mxu0
  %v286 = vadd.f32 0.0, %v285
  %v287 = vpop.f32.mrb[0].mxu0
  %v288 = vadd.f32 0.0, %v287
  %289 = vmatprep.mubr.f32.mxu0 %v149
  %290 = vmatmul.mubr.f32.gmra.mrb[0].mxu0 %v146
  %v291 = vpop.f32.mrb[0].mxu0
  %v292 = vadd.f32 0.0, %v291
  %v293 = vpop.f32.mrb[0].mxu0
  %v294 = vadd.f32 0.0, %v293
  %295 = vdwg.mxu0
  %296 = vmatprep.subr.mxu0 %v58
  %297 = vmatpush1.msra.mxu0 %v57
  %298 = vmatprep.subr.mxu0 %v60
  %299 = vmatpush1.msra.mxu0 %v59
  %300 = vmatprep.subr.mxu0 %v62
  %301 = vmatpush1.msra.mxu0 %v61
  %302 = vmatprep.subr.mxu0 %v64
  %303 = vmatpush1.msra.mxu0 %v63
  %304 = vmatprep.subr.mxu0 %v66
  %305 = vmatpush1.msra.mxu0 %v65
  %306 = vmatprep.subr.mxu0 %v68
  %307 = vmatpush1.msra.mxu0 %v67
  %308 = vmatprep.subr.mxu0 %v70
  %309 = vmatpush1.msra.mxu0 %v69
  %310 = vmatprep.subr.mxu0 %v72
  %311 = vmatpush1.msra.mxu0 %v71
  %312 = vmatprep.subr.mxu0 %v74
  %313 = vmatpush1.msra.mxu0 %v73
  %314 = vmatprep.subr.mxu0 %v76
  %315 = vmatpush1.msra.mxu0 %v75
  %316 = vmatprep.subr.mxu0 %v78
  %317 = vmatpush1.msra.mxu0 %v77
  %318 = vmatprep.subr.mxu0 %v80
  %319 = vmatpush1.msra.mxu0 %v79
  %320 = vmatprep.subr.mxu0 %v82
  %321 = vmatpush1.msra.mxu0 %v81
  %322 = vmatprep.subr.mxu0 %v84
  %323 = vmatpush1.msra.mxu0 %v83
  %324 = vmatprep.subr.mxu0 %v86
  %325 = vmatpush1.msra.mxu0 %v85
  %326 = vmatprep.subr.mxu0 %v88
  %327 = vmatpush1.msra.mxu0 %v87
  %328 = vmatprep.subr.mxu0 %v90
  %329 = vmatpush1.msra.mxu0 %v89
  %330 = vmatprep.subr.mxu0 %v92
  %331 = vmatpush1.msra.mxu0 %v91
  %332 = vmatprep.subr.mxu0 %v94
  %333 = vmatpush1.msra.mxu0 %v93
  %334 = vmatprep.subr.mxu0 %v96
  %335 = vmatpush1.msra.mxu0 %v95
  %336 = vmatprep.subr.mxu0 %v98
  %337 = vmatpush1.msra.mxu0 %v97
  %338 = vmatprep.subr.mxu0 %v100
  %339 = vmatpush1.msra.mxu0 %v99
  %340 = vmatprep.subr.mxu0 %v102
  %341 = vmatpush1.msra.mxu0 %v101
  %342 = vmatprep.subr.mxu0 %v104
  %343 = vmatpush1.msra.mxu0 %v103
  %344 = vmatprep.subr.mxu0 %v106
  %345 = vmatpush1.msra.mxu0 %v105
  %346 = vmatprep.subr.mxu0 %v108
  %347 = vmatpush1.msra.mxu0 %v107
  %348 = vmatprep.subr.mxu0 %v110
  %349 = vmatpush1.msra.mxu0 %v109
  %350 = vmatprep.subr.mxu0 %v112
  %351 = vmatpush1.msra.mxu0 %v111
  %352 = vmatprep.subr.mxu0 %v114
  %353 = vmatpush1.msra.mxu0 %v113
  %354 = vmatprep.subr.mxu0 %v116
  %355 = vmatpush1.msra.mxu0 %v115
  %356 = vmatprep.subr.mxu0 %v118
  %357 = vmatpush1.msra.mxu0 %v117
  %358 = vmatprep.subr.mxu0 %v120
  %359 = vmatpush1.msra.mxu0 %v119
  %360 = vmatprep.mubr.f32.mxu0 %v54
  %361 = vmatmul.mubr.f32.gmra.mrb[0].mxu0 %v53
  %v362 = vpop.f32.mrb[0].mxu0
  %v363 = vadd.f32 %v286, %v362
  %v364 = vpop.f32.mrb[0].mxu0
  %v365 = vadd.f32 %v288, %v364
  %366 = vmatprep.mubr.f32.mxu0 %v56
  %367 = vmatmul.mubr.f32.gmra.mrb[0].mxu0 %v55
  %v368 = vpop.f32.mrb[0].mxu0
  %v369 = vadd.f32 %v292, %v368
  %v370 = vpop.f32.mrb[0].mxu0
  %v371 = vadd.f32 %v294, %v370
  %372 = vdwg.mxu0
  %v373 = vld [vmem:[#allocation2] sm:$0xfc]
  %v374 = vld [vmem:[#allocation2 + $0x8] sm:$0xfc]
  %v375 = vld [vmem:[#allocation2 + $0x10] sm:$0x3]
  %v376 = vld [vmem:[#allocation2 + $0x18] sm:$0x3]
  %v377 = vld [vmem:[#allocation2 + $0x20] sm:$0xfc]
  %v378 = vld [vmem:[#allocation2 + $0x28] sm:$0xfc]
  %v379 = vld [vmem:[#allocation2 + $0x30] sm:$0x3]
  %v380 = vld [vmem:[#allocation2 + $0x38] sm:$0x3]
  %vm389 = vcmask 1045504
  %v390 = vrot.slane %v373, 2
  %v391 = vrot.slane %v375, 2
  %v392 = vsel %vm389, %v390, %v391
  %v393 = vrot.slane %v374, 2
  %v394 = vrot.slane %v376, 2
  %v395 = vsel %vm389, %v393, %v394
  %v396 = vrot.slane %v377, 2
  %v397 = vrot.slane %v379, 2
  %v398 = vsel %vm389, %v396, %v397
  %v399 = vrot.slane %v378, 2
  %v400 = vrot.slane %v380, 2
  %v401 = vsel %vm389, %v399, %v400
  %s406 = scalar_lea.vmem %s1, 1024
  %v407 = vld [vmem:[%s406] sm:$0xff]
  %v408 = vld [vmem:[%s406 + $0x8] sm:$0xff]
  %v409 = vld [vmem:[%s406 + $0x10] sm:$0xff]
  %v410 = vld [vmem:[%s406 + $0x18] sm:$0xff]
  %v411 = vld [vmem:[%s406 + $0x20] sm:$0xff]
  %v412 = vld [vmem:[%s406 + $0x28] sm:$0xff]
  %v413 = vld [vmem:[%s406 + $0x30] sm:$0xff]
  %v414 = vld [vmem:[%s406 + $0x38] sm:$0xff]
  %v415 = vld [vmem:[%s406 + $0x40] sm:$0xff]
  %v416 = vld [vmem:[%s406 + $0x48] sm:$0xff]
  %v417 = vld [vmem:[%s406 + $0x50] sm:$0xff]
  %v418 = vld [vmem:[%s406 + $0x58] sm:$0xff]
  %v419 = vld [vmem:[%s406 + $0x60] sm:$0xff]
  %v420 = vld [vmem:[%s406 + $0x68] sm:$0xff]
  %v421 = vld [vmem:[%s406 + $0x70] sm:$0xff]
  %v422 = vld [vmem:[%s406 + $0x78] sm:$0xff]
  %v423 = vld [vmem:[%s406 + $0x80] sm:$0xff]
  %v424 = vld [vmem:[%s406 + $0x88] sm:$0xff]
  %v425 = vld [vmem:[%s406 + $0x90] sm:$0xff]
  %v426 = vld [vmem:[%s406 + $0x98] sm:$0xff]
  %v427 = vld [vmem:[%s406 + $0xa0] sm:$0xff]
  %v428 = vld [vmem:[%s406 + $0xa8] sm:$0xff]
  %v429 = vld [vmem:[%s406 + $0xb0] sm:$0xff]
  %v430 = vld [vmem:[%s406 + $0xb8] sm:$0xff]
  %v431 = vld [vmem:[%s406 + $0xc0] sm:$0xff]
  %v432 = vld [vmem:[%s406 + $0xc8] sm:$0xff]
  %v433 = vld [vmem:[%s406 + $0xd0] sm:$0xff]
  %v434 = vld [vmem:[%s406 + $0xd8] sm:$0xff]
  %v435 = vld [vmem:[%s406 + $0xe0] sm:$0xff]
  %v436 = vld [vmem:[%s406 + $0xe8] sm:$0xff]
  %v437 = vld [vmem:[%s406 + $0xf0] sm:$0xff]
  %v438 = vld [vmem:[%s406 + $0xf8] sm:$0xff]
  %v439 = vld [vmem:[%s406 + $0x100] sm:$0xff]
  %v440 = vld [vmem:[%s406 + $0x108] sm:$0xff]
  %v441 = vld [vmem:[%s406 + $0x110] sm:$0xff]
  %v442 = vld [vmem:[%s406 + $0x118] sm:$0xff]
  %v443 = vld [vmem:[%s406 + $0x120] sm:$0xff]
  %v444 = vld [vmem:[%s406 + $0x128] sm:$0xff]
  %v445 = vld [vmem:[%s406 + $0x130] sm:$0xff]
  %v446 = vld [vmem:[%s406 + $0x138] sm:$0xff]
  %v447 = vld [vmem:[%s406 + $0x140] sm:$0xff]
  %v448 = vld [vmem:[%s406 + $0x148] sm:$0xff]
  %v449 = vld [vmem:[%s406 + $0x150] sm:$0xff]
  %v450 = vld [vmem:[%s406 + $0x158] sm:$0xff]
  %v451 = vld [vmem:[%s406 + $0x160] sm:$0xff]
  %v452 = vld [vmem:[%s406 + $0x168] sm:$0xff]
  %v453 = vld [vmem:[%s406 + $0x170] sm:$0xff]
  %v454 = vld [vmem:[%s406 + $0x178] sm:$0xff]
  %v455 = vld [vmem:[%s406 + $0x180] sm:$0xff]
  %v456 = vld [vmem:[%s406 + $0x188] sm:$0xff]
  %v457 = vld [vmem:[%s406 + $0x190] sm:$0xff]
  %v458 = vld [vmem:[%s406 + $0x198] sm:$0xff]
  %v459 = vld [vmem:[%s406 + $0x1a0] sm:$0xff]
  %v460 = vld [vmem:[%s406 + $0x1a8] sm:$0xff]
  %v461 = vld [vmem:[%s406 + $0x1b0] sm:$0xff]
  %v462 = vld [vmem:[%s406 + $0x1b8] sm:$0xff]
  %v463 = vld [vmem:[%s406 + $0x1c0] sm:$0xff]
  %v464 = vld [vmem:[%s406 + $0x1c8] sm:$0xff]
  %v465 = vld [vmem:[%s406 + $0x1d0] sm:$0xff]
  %v466 = vld [vmem:[%s406 + $0x1d8] sm:$0xff]
  %v467 = vld [vmem:[%s406 + $0x1e0] sm:$0xff]
  %v468 = vld [vmem:[%s406 + $0x1e8] sm:$0xff]
  %v469 = vld [vmem:[%s406 + $0x1f0] sm:$0xff]
  %v470 = vld [vmem:[%s406 + $0x1f8] sm:$0xff]
  %471 = vmatprep.subr.mxu0 %v408
  %472 = vmatpush1.msra.mxu0 %v407
  %473 = vmatprep.subr.mxu0 %v410
  %474 = vmatpush1.msra.mxu0 %v409
  %475 = vmatprep.subr.mxu0 %v412
  %476 = vmatpush1.msra.mxu0 %v411
  %477 = vmatprep.subr.mxu0 %v414
  %478 = vmatpush1.msra.mxu0 %v413
  %479 = vmatprep.subr.mxu0 %v416
  %480 = vmatpush1.msra.mxu0 %v415
  %481 = vmatprep.subr.mxu0 %v418
  %482 = vmatpush1.msra.mxu0 %v417
  %483 = vmatprep.subr.mxu0 %v420
  %484 = vmatpush1.msra.mxu0 %v419
  %485 = vmatprep.subr.mxu0 %v422
  %486 = vmatpush1.msra.mxu0 %v421
  %487 = vmatprep.subr.mxu0 %v424
  %488 = vmatpush1.msra.mxu0 %v423
  %489 = vmatprep.subr.mxu0 %v426
  %490 = vmatpush1.msra.mxu0 %v425
  %491 = vmatprep.subr.mxu0 %v428
  %492 = vmatpush1.msra.mxu0 %v427
  %493 = vmatprep.subr.mxu0 %v430
  %494 = vmatpush1.msra.mxu0 %v429
  %495 = vmatprep.subr.mxu0 %v432
  %496 = vmatpush1.msra.mxu0 %v431
  %497 = vmatprep.subr.mxu0 %v434
  %498 = vmatpush1.msra.mxu0 %v433
  %499 = vmatprep.subr.mxu0 %v436
  %500 = vmatpush1.msra.mxu0 %v435
  %501 = vmatprep.subr.mxu0 %v438
  %502 = vmatpush1.msra.mxu0 %v437
  %503 = vmatprep.subr.mxu0 %v440
  %504 = vmatpush1.msra.mxu0 %v439
  %505 = vmatprep.subr.mxu0 %v442
  %506 = vmatpush1.msra.mxu0 %v441
  %507 = vmatprep.subr.mxu0 %v444
  %508 = vmatpush1.msra.mxu0 %v443
  %509 = vmatprep.subr.mxu0 %v446
  %510 = vmatpush1.msra.mxu0 %v445
  %511 = vmatprep.subr.mxu0 %v448
  %512 = vmatpush1.msra.mxu0 %v447
  %513 = vmatprep.subr.mxu0 %v450
  %514 = vmatpush1.msra.mxu0 %v449
  %515 = vmatprep.subr.mxu0 %v452
  %516 = vmatpush1.msra.mxu0 %v451
  %517 = vmatprep.subr.mxu0 %v454
  %518 = vmatpush1.msra.mxu0 %v453
  %519 = vmatprep.subr.mxu0 %v456
  %520 = vmatpush1.msra.mxu0 %v455
  %521 = vmatprep.subr.mxu0 %v458
  %522 = vmatpush1.msra.mxu0 %v457
  %523 = vmatprep.subr.mxu0 %v460
  %524 = vmatpush1.msra.mxu0 %v459
  %525 = vmatprep.subr.mxu0 %v462
  %526 = vmatpush1.msra.mxu0 %v461
  %527 = vmatprep.subr.mxu0 %v464
  %528 = vmatpush1.msra.mxu0 %v463
  %529 = vmatprep.subr.mxu0 %v466
  %530 = vmatpush1.msra.mxu0 %v465
  %531 = vmatprep.subr.mxu0 %v468
  %532 = vmatpush1.msra.mxu0 %v467
  %533 = vmatprep.subr.mxu0 %v470
  %534 = vmatpush1.msra.mxu0 %v469
  %535 = vmatprep.mubr.f32.mxu0 %v395
  %536 = vmatmul.mubr.f32.gmra.mrb[0].mxu0 %v392
  %v537 = vpop.f32.mrb[0].mxu0
  %v538 = vadd.f32 0.0, %v537
  %v539 = vpop.f32.mrb[0].mxu0
  %v540 = vadd.f32 0.0, %v539
  %541 = vmatprep.mubr.f32.mxu0 %v401
  %542 = vmatmul.mubr.f32.gmra.mrb[0].mxu0 %v398
  %v543 = vpop.f32.mrb[0].mxu0
  %v544 = vadd.f32 0.0, %v543
  %v545 = vpop.f32.mrb[0].mxu0
  %v546 = vadd.f32 0.0, %v545
  %547 = vdwg.mxu0
  %v548 = vadd.f32 %v363, %v538
  %v549 = vadd.f32 %v365, %v540
  %v550 = vadd.f32 %v369, %v544
  %v551 = vadd.f32 %v371, %v546
  %v552 = vld [vmem:[%s2] sm:$0x1]
  %v553 = vld [vmem:[%s2 + $0x1] sm:$0x1]
  %v554 = vadd.f32 %v548, %v550
  %v555 = vrot.slane %v554, 4
  %v556 = vadd.f32 %v554, %v555
  %v557 = vrot.slane %v556, 2
  %v558 = vadd.f32 %v556, %v557
  %v559 = vrot.slane %v558, 1
  %v560 = vadd.f32 %v558, %v559
  %v561 = vadd.f32 %v549, %v551
  %v562 = vrot.slane %v561, 4
  %v563 = vadd.f32 %v561, %v562
  %v564 = vrot.slane %v563, 2
  %v565 = vadd.f32 %v563, %v564
  %v566 = vrot.slane %v565, 1
  %v567 = vadd.f32 %v565, %v566
  %v568 = vmul.f32 %v548, %v548
  %v569 = vmul.f32 %v549, %v549
  %v570 = vmul.f32 %v550, %v550
  %v571 = vmul.f32 %v551, %v551
  %v572 = vadd.f32 %v568, %v570
  %v573 = vrot.slane %v572, 4
  %v574 = vadd.f32 %v572, %v573
  %v575 = vrot.slane %v574, 2
  %v576 = vadd.f32 %v574, %v575
  %v577 = vrot.slane %v576, 1
  %v578 = vadd.f32 %v576, %v577
  %v579 = vadd.f32 %v569, %v571
  %v580 = vrot.slane %v579, 4
  %v581 = vadd.f32 %v579, %v580
  %v582 = vrot.slane %v581, 2
  %v583 = vadd.f32 %v581, %v582
  %v584 = vrot.slane %v583, 1
  %v585 = vadd.f32 %v583, %v584
  %587 = vrot.lane.b32.xlu0 %v560, 96
  %v588 = vpop.permute.xlu0 %587
  %v590 = vadd.f32 %v560, %v588
  %592 = vrot.lane.b32.xlu0 %v578, 96
  %v593 = vpop.permute.xlu0 %592
  %v595 = vadd.f32 %v578, %v593
  %596 = vrot.lane.b32.xlu0 %v560, 64
  %v597 = vpop.permute.xlu0 %596
  %v599 = vadd.f32 %v590, %v597
  %600 = vrot.lane.b32.xlu0 %v578, 64
  %v601 = vpop.permute.xlu0 %600
  %v603 = vadd.f32 %v595, %v601
  %604 = vrot.lane.b32.xlu0 %v560, 32
  %v605 = vpop.permute.xlu0 %604
  %v607 = vadd.f32 %v599, %v605
  %608 = vrot.lane.b32.xlu0 %v578, 32
  %v609 = vpop.permute.xlu0 %608
  %v611 = vadd.f32 %v603, %v609
  %v612 = vadd.f32 %v607, %v567
  %v613 = vadd.f32 %v611, %v585
  %615 = vrot.lane.b32.xlu0 %v567, 96
  %v616 = vpop.permute.xlu0 %615
  %v618 = vadd.f32 %v612, %v616
  %620 = vrot.lane.b32.xlu0 %v585, 96
  %v621 = vpop.permute.xlu0 %620
  %v623 = vadd.f32 %v613, %v621
  %624 = vrot.lane.b32.xlu0 %v567, 64
  %v625 = vpop.permute.xlu0 %624
  %v627 = vadd.f32 %v618, %v625
  %628 = vrot.lane.b32.xlu0 %v585, 64
  %v629 = vpop.permute.xlu0 %628
  %v631 = vadd.f32 %v623, %v629
  %632 = vrot.lane.b32.xlu0 %v567, 32
  %v633 = vpop.permute.xlu0 %632
  %v635 = vadd.f32 %v627, %v633
  %636 = vrot.lane.b32.xlu0 %v585, 32
  %v637 = vpop.permute.xlu0 %636
  %v639 = vadd.f32 %v631, %v637
  %v640 = vmul.f32 %v635, 0.0078125
  %v641 = vmul.f32 %v639, 0.0078125
  %v642 = vmul.f32 %v640, %v640
  %v643 = vsub.f32 %v641, %v642
  %v644 = vmax.f32 %v643, 0.0
  %v645 = vadd.f32 %v644, 1e-05
  %v646 = vrsqrt.pop %v645
  %v647 = vmul.f32 %v646, %v552
  %v648 = vmul.f32 %v640, %v647
  %v649 = vsub.f32 %v553, %v648
  %651 = vrot.lane.b32.xlu0 %v647, 32
  %v652 = vpop.permute.xlu0 %651
  %654 = vrot.lane.b32.xlu0 %v647, 64
  %v655 = vpop.permute.xlu0 %654
  %657 = vrot.lane.b32.xlu0 %v647, 96
  %v658 = vpop.permute.xlu0 %657
  %vm660 = vcmask 261120
  %v661 = vsel %vm660, %v647, %v652
  %vm662 = vcmask 523264
  %v663 = vsel %vm662, %v661, %v655
  %vm664 = vcmask 785408
  %v665 = vsel %vm664, %v663, %v658
  %667 = vrot.lane.b32.xlu0 %v649, 32
  %v668 = vpop.permute.xlu0 %667
  %670 = vrot.lane.b32.xlu0 %v649, 64
  %v671 = vpop.permute.xlu0 %670
  %673 = vrot.lane.b32.xlu0 %v649, 96
  %v674 = vpop.permute.xlu0 %673
  %v676 = vsel %vm660, %v649, %v668
  %v677 = vsel %vm662, %v676, %v671
  %v678 = vsel %vm664, %v677, %v674
  %v679 = vlaneseq
  %v680 = vshrl.u32 %v679, 7
  %v681 = vsub.s32 0, %v680
  %v682 = vrot.slane %v665, %v681
  %v683 = vmul.f32 %v548, %v682
  %v684 = vmul.f32 %v549, %v682
  %v685 = vmul.f32 %v550, %v682
  %v686 = vmul.f32 %v551, %v682
  %v687 = vlaneseq
  %v688 = vshrl.u32 %v687, 7
  %v689 = vsub.s32 0, %v688
  %v690 = vrot.slane %v678, %v689
  %v691 = vadd.f32 %v683, %v690
  %v692 = vadd.f32 %v684, %v690
  %v693 = vadd.f32 %v685, %v690
  %v694 = vadd.f32 %v686, %v690
  %v695 = vmax.f32 %v691, 0.0
  %v696 = vmax.f32 %v692, 0.0
  %v697 = vmax.f32 %v693, 0.0
  %v698 = vmax.f32 %v694, 0.0
  %v703 = vrot.slane %v695, 7
  %v704 = vrot.slane %v696, 7
  %v705 = vrot.slane %v697, 7
  %v706 = vrot.slane %v698, 7
  %711 = vst [vmem:[#allocation2] sm:$0xfe] %v703
  %712 = vst [vmem:[#allocation2 + $0x8] sm:$0xfe] %v704
  %713 = vst [vmem:[#allocation2 + $0x10] sm:$0x1] %v703
  %714 = vst [vmem:[#allocation2 + $0x18] sm:$0x1] %v704
  %715 = vst [vmem:[#allocation2 + $0x20] sm:$0xfe] %v705
  %716 = vst [vmem:[#allocation2 + $0x28] sm:$0xfe] %v706
  %717 = vst [vmem:[#allocation2 + $0x30] sm:$0x1] %v705
  %718 = vst [vmem:[#allocation2 + $0x38] sm:$0x1] %v706
  %v719 = vld [vmem:[#allocation2] sm:$0xff]
  %v720 = vld [vmem:[#allocation2 + $0x8] sm:$0xff]
  %v721 = vld [vmem:[#allocation2 + $0x20] sm:$0xff]
  %v722 = vld [vmem:[#allocation2 + $0x28] sm:$0xff]
  %s723 = scalar_lea.vmem %s1, 1536
  %v724 = vld [vmem:[%s723] sm:$0xff]
  %v725 = vld [vmem:[%s723 + $0x8] sm:$0xff]
  %v726 = vld [vmem:[%s723 + $0x10] sm:$0xff]
  %v727 = vld [vmem:[%s723 + $0x18] sm:$0xff]
  %v728 = vld [vmem:[%s723 + $0x20] sm:$0xff]
  %v729 = vld [vmem:[%s723 + $0x28] sm:$0xff]
  %v730 = vld [vmem:[%s723 + $0x30] sm:$0xff]
  %v731 = vld [vmem:[%s723 + $0x38] sm:$0xff]
  %v732 = vld [vmem:[%s723 + $0x40] sm:$0xff]
  %v733 = vld [vmem:[%s723 + $0x48] sm:$0xff]
  %v734 = vld [vmem:[%s723 + $0x50] sm:$0xff]
  %v735 = vld [vmem:[%s723 + $0x58] sm:$0xff]
  %v736 = vld [vmem:[%s723 + $0x60] sm:$0xff]
  %v737 = vld [vmem:[%s723 + $0x68] sm:$0xff]
  %v738 = vld [vmem:[%s723 + $0x70] sm:$0xff]
  %v739 = vld [vmem:[%s723 + $0x78] sm:$0xff]
  %v740 = vld [vmem:[%s723 + $0x80] sm:$0xff]
  %v741 = vld [vmem:[%s723 + $0x88] sm:$0xff]
  %v742 = vld [vmem:[%s723 + $0x90] sm:$0xff]
  %v743 = vld [vmem:[%s723 + $0x98] sm:$0xff]
  %v744 = vld [vmem:[%s723 + $0xa0] sm:$0xff]
  %v745 = vld [vmem:[%s723 + $0xa8] sm:$0xff]
  %v746 = vld [vmem:[%s723 + $0xb0] sm:$0xff]
  %v747 = vld [vmem:[%s723 + $0xb8] sm:$0xff]
  %v748 = vld [vmem:[%s723 + $0xc0] sm:$0xff]
  %v749 = vld [vmem:[%s723 + $0xc8] sm:$0xff]
  %v750 = vld [vmem:[%s723 + $0xd0] sm:$0xff]
  %v751 = vld [vmem:[%s723 + $0xd8] sm:$0xff]
  %v752 = vld [vmem:[%s723 + $0xe0] sm:$0xff]
  %v753 = vld [vmem:[%s723 + $0xe8] sm:$0xff]
  %v754 = vld [vmem:[%s723 + $0xf0] sm:$0xff]
  %v755 = vld [vmem:[%s723 + $0xf8] sm:$0xff]
  %v756 = vld [vmem:[%s723 + $0x100] sm:$0xff]
  %v757 = vld [vmem:[%s723 + $0x108] sm:$0xff]
  %v758 = vld [vmem:[%s723 + $0x110] sm:$0xff]
  %v759 = vld [vmem:[%s723 + $0x118] sm:$0xff]
  %v760 = vld [vmem:[%s723 + $0x120] sm:$0xff]
  %v761 = vld [vmem:[%s723 + $0x128] sm:$0xff]
  %v762 = vld [vmem:[%s723 + $0x130] sm:$0xff]
  %v763 = vld [vmem:[%s723 + $0x138] sm:$0xff]
  %v764 = vld [vmem:[%s723 + $0x140] sm:$0xff]
  %v765 = vld [vmem:[%s723 + $0x148] sm:$0xff]
  %v766 = vld [vmem:[%s723 + $0x150] sm:$0xff]
  %v767 = vld [vmem:[%s723 + $0x158] sm:$0xff]
  %v768 = vld [vmem:[%s723 + $0x160] sm:$0xff]
  %v769 = vld [vmem:[%s723 + $0x168] sm:$0xff]
  %v770 = vld [vmem:[%s723 + $0x170] sm:$0xff]
  %v771 = vld [vmem:[%s723 + $0x178] sm:$0xff]
  %v772 = vld [vmem:[%s723 + $0x180] sm:$0xff]
  %v773 = vld [vmem:[%s723 + $0x188] sm:$0xff]
  %v774 = vld [vmem:[%s723 + $0x190] sm:$0xff]
  %v775 = vld [vmem:[%s723 + $0x198] sm:$0xff]
  %v776 = vld [vmem:[%s723 + $0x1a0] sm:$0xff]
  %v777 = vld [vmem:[%s723 + $0x1a8] sm:$0xff]
  %v778 = vld [vmem:[%s723 + $0x1b0] sm:$0xff]
  %v779 = vld [vmem:[%s723 + $0x1b8] sm:$0xff]
  %v780 = vld [vmem:[%s723 + $0x1c0] sm:$0xff]
  %v781 = vld [vmem:[%s723 + $0x1c8] sm:$0xff]
  %v782 = vld [vmem:[%s723 + $0x1d0] sm:$0xff]
  %v783 = vld [vmem:[%s723 + $0x1d8] sm:$0xff]
  %v784 = vld [vmem:[%s723 + $0x1e0] sm:$0xff]
  %v785 = vld [vmem:[%s723 + $0x1e8] sm:$0xff]
  %v786 = vld [vmem:[%s723 + $0x1f0] sm:$0xff]
  %v787 = vld [vmem:[%s723 + $0x1f8] sm:$0xff]
  %v788 = vld [vmem:[#allocation2] sm:$0xfe]
  %v789 = vld [vmem:[#allocation2 + $0x8] sm:$0xfe]
  %v790 = vld [vmem:[#allocation2 + $0x10] sm:$0x1]
  %v791 = vld [vmem:[#allocation2 + $0x18] sm:$0x1]
  %v792 = vld [vmem:[#allocation2 + $0x20] sm:$0xfe]
  %v793 = vld [vmem:[#allocation2 + $0x28] sm:$0xfe]
  %v794 = vld [vmem:[#allocation2 + $0x30] sm:$0x1]
  %v795 = vld [vmem:[#allocation2 + $0x38] sm:$0x1]
  %v804 = vrot.slane %v788, 1
  %v805 = vrot.slane %v790, 1
  %v806 = vsel %vm137, %v804, %v805
  %v807 = vrot.slane %v789, 1
  %v808 = vrot.slane %v791, 1
  %v809 = vsel %vm137, %v807, %v808
  %v810 = vrot.slane %v792, 1
  %v811 = vrot.slane %v794, 1
  %v812 = vsel %vm137, %v810, %v811
  %v813 = vrot.slane %v793, 1
  %v814 = vrot.slane %v795, 1
  %v815 = vsel %vm137, %v813, %v814
  %s820 = scalar_lea.vmem %s1, 2048
  %v821 = vld [vmem:[%s820] sm:$0xff]
  %v822 = vld [vmem:[%s820 + $0x8] sm:$0xff]
  %v823 = vld [vmem:[%s820 + $0x10] sm:$0xff]
  %v824 = vld [vmem:[%s820 + $0x18] sm:$0xff]
  %v825 = vld [vmem:[%s820 + $0x20] sm:$0xff]
  %v826 = vld [vmem:[%s820 + $0x28] sm:$0xff]
  %v827 = vld [vmem:[%s820 + $0x30] sm:$0xff]
  %v828 = vld [vmem:[%s820 + $0x38] sm:$0xff]
  %v829 = vld [vmem:[%s820 + $0x40] sm:$0xff]
  %v830 = vld [vmem:[%s820 + $0x48] sm:$0xff]
  %v831 = vld [vmem:[%s820 + $0x50] sm:$0xff]
  %v832 = vld [vmem:[%s820 + $0x58] sm:$0xff]
  %v833 = vld [vmem:[%s820 + $0x60] sm:$0xff]
  %v834 = vld [vmem:[%s820 + $0x68] sm:$0xff]
  %v835 = vld [vmem:[%s820 + $0x70] sm:$0xff]
  %v836 = vld [vmem:[%s820 + $0x78] sm:$0xff]
  %v837 = vld [vmem:[%s820 + $0x80] sm:$0xff]
  %v838 = vld [vmem:[%s820 + $0x88] sm:$0xff]
  %v839 = vld [vmem:[%s820 + $0x90] sm:$0xff]
  %v840 = vld [vmem:[%s820 + $0x98] sm:$0xff]
  %v841 = vld [vmem:[%s820 + $0xa0] sm:$0xff]
  %v842 = vld [vmem:[%s820 + $0xa8] sm:$0xff]
  %v843 = vld [vmem:[%s820 + $0xb0] sm:$0xff]
  %v844 = vld [vmem:[%s820 + $0xb8] sm:$0xff]
  %v845 = vld [vmem:[%s820 + $0xc0] sm:$0xff]
  %v846 = vld [vmem:[%s820 + $0xc8] sm:$0xff]
  %v847 = vld [vmem:[%s820 + $0xd0] sm:$0xff]
  %v848 = vld [vmem:[%s820 + $0xd8] sm:$0xff]
  %v849 = vld [vmem:[%s820 + $0xe0] sm:$0xff]
  %v850 = vld [vmem:[%s820 + $0xe8] sm:$0xff]
  %v851 = vld [vmem:[%s820 + $0xf0] sm:$0xff]
  %v852 = vld [vmem:[%s820 + $0xf8] sm:$0xff]
  %v853 = vld [vmem:[%s820 + $0x100] sm:$0xff]
  %v854 = vld [vmem:[%s820 + $0x108] sm:$0xff]
  %v855 = vld [vmem:[%s820 + $0x110] sm:$0xff]
  %v856 = vld [vmem:[%s820 + $0x118] sm:$0xff]
  %v857 = vld [vmem:[%s820 + $0x120] sm:$0xff]
  %v858 = vld [vmem:[%s820 + $0x128] sm:$0xff]
  %v859 = vld [vmem:[%s820 + $0x130] sm:$0xff]
  %v860 = vld [vmem:[%s820 + $0x138] sm:$0xff]
  %v861 = vld [vmem:[%s820 + $0x140] sm:$0xff]
  %v862 = vld [vmem:[%s820 + $0x148] sm:$0xff]
  %v863 = vld [vmem:[%s820 + $0x150] sm:$0xff]
  %v864 = vld [vmem:[%s820 + $0x158] sm:$0xff]
  %v865 = vld [vmem:[%s820 + $0x160] sm:$0xff]
  %v866 = vld [vmem:[%s820 + $0x168] sm:$0xff]
  %v867 = vld [vmem:[%s820 + $0x170] sm:$0xff]
  %v868 = vld [vmem:[%s820 + $0x178] sm:$0xff]
  %v869 = vld [vmem:[%s820 + $0x180] sm:$0xff]
  %v870 = vld [vmem:[%s820 + $0x188] sm:$0xff]
  %v871 = vld [vmem:[%s820 + $0x190] sm:$0xff]
  %v872 = vld [vmem:[%s820 + $0x198] sm:$0xff]
  %v873 = vld [vmem:[%s820 + $0x1a0] sm:$0xff]
  %v874 = vld [vmem:[%s820 + $0x1a8] sm:$0xff]
  %v875 = vld [vmem:[%s820 + $0x1b0] sm:$0xff]
  %v876 = vld [vmem:[%s820 + $0x1b8] sm:$0xff]
  %v877 = vld [vmem:[%s820 + $0x1c0] sm:$0xff]
  %v878 = vld [vmem:[%s820 + $0x1c8] sm:$0xff]
  %v879 = vld [vmem:[%s820 + $0x1d0] sm:$0xff]
  %v880 = vld [vmem:[%s820 + $0x1d8] sm:$0xff]
  %v881 = vld [vmem:[%s820 + $0x1e0] sm:$0xff]
  %v882 = vld [vmem:[%s820 + $0x1e8] sm:$0xff]
  %v883 = vld [vmem:[%s820 + $0x1f0] sm:$0xff]
  %v884 = vld [vmem:[%s820 + $0x1f8] sm:$0xff]
  %885 = vmatprep.subr.mxu0 %v822
  %886 = vmatpush1.msra.mxu0 %v821
  %887 = vmatprep.subr.mxu0 %v824
  %888 = vmatpush1.msra.mxu0 %v823
  %889 = vmatprep.subr.mxu0 %v826
  %890 = vmatpush1.msra.mxu0 %v825
  %891 = vmatprep.subr.mxu0 %v828
  %892 = vmatpush1.msra.mxu0 %v827
  %893 = vmatprep.subr.mxu0 %v830
  %894 = vmatpush1.msra.mxu0 %v829
  %895 = vmatprep.subr.mxu0 %v832
  %896 = vmatpush1.msra.mxu0 %v831
  %897 = vmatprep.subr.mxu0 %v834
  %898 = vmatpush1.msra.mxu0 %v833
  %899 = vmatprep.subr.mxu0 %v836
  %900 = vmatpush1.msra.mxu0 %v835
  %901 = vmatprep.subr.mxu0 %v838
  %902 = vmatpush1.msra.mxu0 %v837
  %903 = vmatprep.subr.mxu0 %v840
  %904 = vmatpush1.msra.mxu0 %v839
  %905 = vmatprep.subr.mxu0 %v842
  %906 = vmatpush1.msra.mxu0 %v841
  %907 = vmatprep.subr.mxu0 %v844
  %908 = vmatpush1.msra.mxu0 %v843
  %909 = vmatprep.subr.mxu0 %v846
  %910 = vmatpush1.msra.mxu0 %v845
  %911 = vmatprep.subr.mxu0 %v848
  %912 = vmatpush1.msra.mxu0 %v847
  %913 = vmatprep.subr.mxu0 %v850
  %914 = vmatpush1.msra.mxu0 %v849
  %915 = vmatprep.subr.mxu0 %v852
  %916 = vmatpush1.msra.mxu0 %v851
  %917 = vmatprep.subr.mxu0 %v854
  %918 = vmatpush1.msra.mxu0 %v853
  %919 = vmatprep.subr.mxu0 %v856
  %920 = vmatpush1.msra.mxu0 %v855
  %921 = vmatprep.subr.mxu0 %v858
  %922 = vmatpush1.msra.mxu0 %v857
  %923 = vmatprep.subr.mxu0 %v860
  %924 = vmatpush1.msra.mxu0 %v859
  %925 = vmatprep.subr.mxu0 %v862
  %926 = vmatpush1.msra.mxu0 %v861
  %927 = vmatprep.subr.mxu0 %v864
  %928 = vmatpush1.msra.mxu0 %v863
  %929 = vmatprep.subr.mxu0 %v866
  %930 = vmatpush1.msra.mxu0 %v865
  %931 = vmatprep.subr.mxu0 %v868
  %932 = vmatpush1.msra.mxu0 %v867
  %933 = vmatprep.subr.mxu0 %v870
  %934 = vmatpush1.msra.mxu0 %v869
  %935 = vmatprep.subr.mxu0 %v872
  %936 = vmatpush1.msra.mxu0 %v871
  %937 = vmatprep.subr.mxu0 %v874
  %938 = vmatpush1.msra.mxu0 %v873
  %939 = vmatprep.subr.mxu0 %v876
  %940 = vmatpush1.msra.mxu0 %v875
  %941 = vmatprep.subr.mxu0 %v878
  %942 = vmatpush1.msra.mxu0 %v877
  %943 = vmatprep.subr.mxu0 %v880
  %944 = vmatpush1.msra.mxu0 %v879
  %945 = vmatprep.subr.mxu0 %v882
  %946 = vmatpush1.msra.mxu0 %v881
  %947 = vmatprep.subr.mxu0 %v884
  %948 = vmatpush1.msra.mxu0 %v883
  %949 = vmatprep.mubr.f32.mxu0 %v809
  %950 = vmatmul.mubr.f32.gmra.mrb[0].mxu0 %v806
  %v951 = vpop.f32.mrb[0].mxu0
  %v952 = vadd.f32 0.0, %v951
  %v953 = vpop.f32.mrb[0].mxu0
  %v954 = vadd.f32 0.0, %v953
  %955 = vmatprep.mubr.f32.mxu0 %v815
  %956 = vmatmul.mubr.f32.gmra.mrb[0].mxu0 %v812
  %v957 = vpop.f32.mrb[0].mxu0
  %v958 = vadd.f32 0.0, %v957
  %v959 = vpop.f32.mrb[0].mxu0
  %v960 = vadd.f32 0.0, %v959
  %961 = vdwg.mxu0
  %962 = vmatprep.subr.mxu0 %v725
  %963 = vmatpush1.msra.mxu0 %v724
  %964 = vmatprep.subr.mxu0 %v727
  %965 = vmatpush1.msra.mxu0 %v726
  %966 = vmatprep.subr.mxu0 %v729
  %967 = vmatpush1.msra.mxu0 %v728
  %968 = vmatprep.subr.mxu0 %v731
  %969 = vmatpush1.msra.mxu0 %v730
  %970 = vmatprep.subr.mxu0 %v733
  %971 = vmatpush1.msra.mxu0 %v732
  %972 = vmatprep.subr.mxu0 %v735
  %973 = vmatpush1.msra.mxu0 %v734
  %974 = vmatprep.subr.mxu0 %v737
  %975 = vmatpush1.msra.mxu0 %v736
  %976 = vmatprep.subr.mxu0 %v739
  %977 = vmatpush1.msra.mxu0 %v738
  %978 = vmatprep.subr.mxu0 %v741
  %979 = vmatpush1.msra.mxu0 %v740
  %980 = vmatprep.subr.mxu0 %v743
  %981 = vmatpush1.msra.mxu0 %v742
  %982 = vmatprep.subr.mxu0 %v745
  %983 = vmatpush1.msra.mxu0 %v744
  %984 = vmatprep.subr.mxu0 %v747
  %985 = vmatpush1.msra.mxu0 %v746
  %986 = vmatprep.subr.mxu0 %v749
  %987 = vmatpush1.msra.mxu0 %v748
  %988 = vmatprep.subr.mxu0 %v751
  %989 = vmatpush1.msra.mxu0 %v750
  %990 = vmatprep.subr.mxu0 %v753
  %991 = vmatpush1.msra.mxu0 %v752
  %992 = vmatprep.subr.mxu0 %v755
  %993 = vmatpush1.msra.mxu0 %v754
  %994 = vmatprep.subr.mxu0 %v757
  %995 = vmatpush1.msra.mxu0 %v756
  %996 = vmatprep.subr.mxu0 %v759
  %997 = vmatpush1.msra.mxu0 %v758
  %998 = vmatprep.subr.mxu0 %v761
  %999 = vmatpush1.msra.mxu0 %v760
  %1000 = vmatprep.subr.mxu0 %v763
  %1001 = vmatpush1.msra.mxu0 %v762
  %1002 = vmatprep.subr.mxu0 %v765
  %1003 = vmatpush1.msra.mxu0 %v764
  %1004 = vmatprep.subr.mxu0 %v767
  %1005 = vmatpush1.msra.mxu0 %v766
  %1006 = vmatprep.subr.mxu0 %v769
  %1007 = vmatpush1.msra.mxu0 %v768
  %1008 = vmatprep.subr.mxu0 %v771
  %1009 = vmatpush1.msra.mxu0 %v770
  %1010 = vmatprep.subr.mxu0 %v773
  %1011 = vmatpush1.msra.mxu0 %v772
  %1012 = vmatprep.subr.mxu0 %v775
  %1013 = vmatpush1.msra.mxu0 %v774
  %1014 = vmatprep.subr.mxu0 %v777
  %1015 = vmatpush1.msra.mxu0 %v776
  %1016 = vmatprep.subr.mxu0 %v779
  %1017 = vmatpush1.msra.mxu0 %v778
  %1018 = vmatprep.subr.mxu0 %v781
  %1019 = vmatpush1.msra.mxu0 %v780
  %1020 = vmatprep.subr.mxu0 %v783
  %1021 = vmatpush1.msra.mxu0 %v782
  %1022 = vmatprep.subr.mxu0 %v785
  %1023 = vmatpush1.msra.mxu0 %v784
  %1024 = vmatprep.subr.mxu0 %v787
  %1025 = vmatpush1.msra.mxu0 %v786
  %1026 = vmatprep.mubr.f32.mxu0 %v720
  %1027 = vmatmul.mubr.f32.gmra.mrb[0].mxu0 %v719
  %v1028 = vpop.f32.mrb[0].mxu0
  %v1029 = vadd.f32 %v952, %v1028
  %v1030 = vpop.f32.mrb[0].mxu0
  %v1031 = vadd.f32 %v954, %v1030
  %1032 = vmatprep.mubr.f32.mxu0 %v722
  %1033 = vmatmul.mubr.f32.gmra.mrb[0].mxu0 %v721
  %v1034 = vpop.f32.mrb[0].mxu0
  %v1035 = vadd.f32 %v958, %v1034
  %v1036 = vpop.f32.mrb[0].mxu0
  %v1037 = vadd.f32 %v960, %v1036
  %1038 = vdwg.mxu0
  %v1039 = vld [vmem:[#allocation2] sm:$0xfc]
  %v1040 = vld [vmem:[#allocation2 + $0x8] sm:$0xfc]
  %v1041 = vld [vmem:[#allocation2 + $0x10] sm:$0x3]
  %v1042 = vld [vmem:[#allocation2 + $0x18] sm:$0x3]
  %v1043 = vld [vmem:[#allocation2 + $0x20] sm:$0xfc]
  %v1044 = vld [vmem:[#allocation2 + $0x28] sm:$0xfc]
  %v1045 = vld [vmem:[#allocation2 + $0x30] sm:$0x3]
  %v1046 = vld [vmem:[#allocation2 + $0x38] sm:$0x3]
  %v1055 = vrot.slane %v1039, 2
  %v1056 = vrot.slane %v1041, 2
  %v1057 = vsel %vm389, %v1055, %v1056
  %v1058 = vrot.slane %v1040, 2
  %v1059 = vrot.slane %v1042, 2
  %v1060 = vsel %vm389, %v1058, %v1059
  %v1061 = vrot.slane %v1043, 2
  %v1062 = vrot.slane %v1045, 2
  %v1063 = vsel %vm389, %v1061, %v1062
  %v1064 = vrot.slane %v1044, 2
  %v1065 = vrot.slane %v1046, 2
  %v1066 = vsel %vm389, %v1064, %v1065
  %s1071 = scalar_lea.vmem %s1, 2560
  %v1072 = vld [vmem:[%s1071] sm:$0xff]
  %v1073 = vld [vmem:[%s1071 + $0x8] sm:$0xff]
  %v1074 = vld [vmem:[%s1071 + $0x10] sm:$0xff]
  %v1075 = vld [vmem:[%s1071 + $0x18] sm:$0xff]
  %v1076 = vld [vmem:[%s1071 + $0x20] sm:$0xff]
  %v1077 = vld [vmem:[%s1071 + $0x28] sm:$0xff]
  %v1078 = vld [vmem:[%s1071 + $0x30] sm:$0xff]
  %v1079 = vld [vmem:[%s1071 + $0x38] sm:$0xff]
  %v1080 = vld [vmem:[%s1071 + $0x40] sm:$0xff]
  %v1081 = vld [vmem:[%s1071 + $0x48] sm:$0xff]
  %v1082 = vld [vmem:[%s1071 + $0x50] sm:$0xff]
  %v1083 = vld [vmem:[%s1071 + $0x58] sm:$0xff]
  %v1084 = vld [vmem:[%s1071 + $0x60] sm:$0xff]
  %v1085 = vld [vmem:[%s1071 + $0x68] sm:$0xff]
  %v1086 = vld [vmem:[%s1071 + $0x70] sm:$0xff]
  %v1087 = vld [vmem:[%s1071 + $0x78] sm:$0xff]
  %v1088 = vld [vmem:[%s1071 + $0x80] sm:$0xff]
  %v1089 = vld [vmem:[%s1071 + $0x88] sm:$0xff]
  %v1090 = vld [vmem:[%s1071 + $0x90] sm:$0xff]
  %v1091 = vld [vmem:[%s1071 + $0x98] sm:$0xff]
  %v1092 = vld [vmem:[%s1071 + $0xa0] sm:$0xff]
  %v1093 = vld [vmem:[%s1071 + $0xa8] sm:$0xff]
  %v1094 = vld [vmem:[%s1071 + $0xb0] sm:$0xff]
  %v1095 = vld [vmem:[%s1071 + $0xb8] sm:$0xff]
  %v1096 = vld [vmem:[%s1071 + $0xc0] sm:$0xff]
  %v1097 = vld [vmem:[%s1071 + $0xc8] sm:$0xff]
  %v1098 = vld [vmem:[%s1071 + $0xd0] sm:$0xff]
  %v1099 = vld [vmem:[%s1071 + $0xd8] sm:$0xff]
  %v1100 = vld [vmem:[%s1071 + $0xe0] sm:$0xff]
  %v1101 = vld [vmem:[%s1071 + $0xe8] sm:$0xff]
  %v1102 = vld [vmem:[%s1071 + $0xf0] sm:$0xff]
  %v1103 = vld [vmem:[%s1071 + $0xf8] sm:$0xff]
  %v1104 = vld [vmem:[%s1071 + $0x100] sm:$0xff]
  %v1105 = vld [vmem:[%s1071 + $0x108] sm:$0xff]
  %v1106 = vld [vmem:[%s1071 + $0x110] sm:$0xff]
  %v1107 = vld [vmem:[%s1071 + $0x118] sm:$0xff]
  %v1108 = vld [vmem:[%s1071 + $0x120] sm:$0xff]
  %v1109 = vld [vmem:[%s1071 + $0x128] sm:$0xff]
  %v1110 = vld [vmem:[%s1071 + $0x130] sm:$0xff]
  %v1111 = vld [vmem:[%s1071 + $0x138] sm:$0xff]
  %v1112 = vld [vmem:[%s1071 + $0x140] sm:$0xff]
  %v1113 = vld [vmem:[%s1071 + $0x148] sm:$0xff]
  %v1114 = vld [vmem:[%s1071 + $0x150] sm:$0xff]
  %v1115 = vld [vmem:[%s1071 + $0x158] sm:$0xff]
  %v1116 = vld [vmem:[%s1071 + $0x160] sm:$0xff]
  %v1117 = vld [vmem:[%s1071 + $0x168] sm:$0xff]
  %v1118 = vld [vmem:[%s1071 + $0x170] sm:$0xff]
  %v1119 = vld [vmem:[%s1071 + $0x178] sm:$0xff]
  %v1120 = vld [vmem:[%s1071 + $0x180] sm:$0xff]
  %v1121 = vld [vmem:[%s1071 + $0x188] sm:$0xff]
  %v1122 = vld [vmem:[%s1071 + $0x190] sm:$0xff]
  %v1123 = vld [vmem:[%s1071 + $0x198] sm:$0xff]
  %v1124 = vld [vmem:[%s1071 + $0x1a0] sm:$0xff]
  %v1125 = vld [vmem:[%s1071 + $0x1a8] sm:$0xff]
  %v1126 = vld [vmem:[%s1071 + $0x1b0] sm:$0xff]
  %v1127 = vld [vmem:[%s1071 + $0x1b8] sm:$0xff]
  %v1128 = vld [vmem:[%s1071 + $0x1c0] sm:$0xff]
  %v1129 = vld [vmem:[%s1071 + $0x1c8] sm:$0xff]
  %v1130 = vld [vmem:[%s1071 + $0x1d0] sm:$0xff]
  %v1131 = vld [vmem:[%s1071 + $0x1d8] sm:$0xff]
  %v1132 = vld [vmem:[%s1071 + $0x1e0] sm:$0xff]
  %v1133 = vld [vmem:[%s1071 + $0x1e8] sm:$0xff]
  %v1134 = vld [vmem:[%s1071 + $0x1f0] sm:$0xff]
  %v1135 = vld [vmem:[%s1071 + $0x1f8] sm:$0xff]
  %1136 = vmatprep.subr.mxu0 %v1073
  %1137 = vmatpush1.msra.mxu0 %v1072
  %1138 = vmatprep.subr.mxu0 %v1075
  %1139 = vmatpush1.msra.mxu0 %v1074
  %1140 = vmatprep.subr.mxu0 %v1077
  %1141 = vmatpush1.msra.mxu0 %v1076
  %1142 = vmatprep.subr.mxu0 %v1079
  %1143 = vmatpush1.msra.mxu0 %v1078
  %1144 = vmatprep.subr.mxu0 %v1081
  %1145 = vmatpush1.msra.mxu0 %v1080
  %1146 = vmatprep.subr.mxu0 %v1083
  %1147 = vmatpush1.msra.mxu0 %v1082
  %1148 = vmatprep.subr.mxu0 %v1085
  %1149 = vmatpush1.msra.mxu0 %v1084
  %1150 = vmatprep.subr.mxu0 %v1087
  %1151 = vmatpush1.msra.mxu0 %v1086
  %1152 = vmatprep.subr.mxu0 %v1089
  %1153 = vmatpush1.msra.mxu0 %v1088
  %1154 = vmatprep.subr.mxu0 %v1091
  %1155 = vmatpush1.msra.mxu0 %v1090
  %1156 = vmatprep.subr.mxu0 %v1093
  %1157 = vmatpush1.msra.mxu0 %v1092
  %1158 = vmatprep.subr.mxu0 %v1095
  %1159 = vmatpush1.msra.mxu0 %v1094
  %1160 = vmatprep.subr.mxu0 %v1097
  %1161 = vmatpush1.msra.mxu0 %v1096
  %1162 = vmatprep.subr.mxu0 %v1099
  %1163 = vmatpush1.msra.mxu0 %v1098
  %1164 = vmatprep.subr.mxu0 %v1101
  %1165 = vmatpush1.msra.mxu0 %v1100
  %1166 = vmatprep.subr.mxu0 %v1103
  %1167 = vmatpush1.msra.mxu0 %v1102
  %1168 = vmatprep.subr.mxu0 %v1105
  %1169 = vmatpush1.msra.mxu0 %v1104
  %1170 = vmatprep.subr.mxu0 %v1107
  %1171 = vmatpush1.msra.mxu0 %v1106
  %1172 = vmatprep.subr.mxu0 %v1109
  %1173 = vmatpush1.msra.mxu0 %v1108
  %1174 = vmatprep.subr.mxu0 %v1111
  %1175 = vmatpush1.msra.mxu0 %v1110
  %1176 = vmatprep.subr.mxu0 %v1113
  %1177 = vmatpush1.msra.mxu0 %v1112
  %1178 = vmatprep.subr.mxu0 %v1115
  %1179 = vmatpush1.msra.mxu0 %v1114
  %1180 = vmatprep.subr.mxu0 %v1117
  %1181 = vmatpush1.msra.mxu0 %v1116
  %1182 = vmatprep.subr.mxu0 %v1119
  %1183 = vmatpush1.msra.mxu0 %v1118
  %1184 = vmatprep.subr.mxu0 %v1121
  %1185 = vmatpush1.msra.mxu0 %v1120
  %1186 = vmatprep.subr.mxu0 %v1123
  %1187 = vmatpush1.msra.mxu0 %v1122
  %1188 = vmatprep.subr.mxu0 %v1125
  %1189 = vmatpush1.msra.mxu0 %v1124
  %1190 = vmatprep.subr.mxu0 %v1127
  %1191 = vmatpush1.msra.mxu0 %v1126
  %1192 = vmatprep.subr.mxu0 %v1129
  %1193 = vmatpush1.msra.mxu0 %v1128
  %1194 = vmatprep.subr.mxu0 %v1131
  %1195 = vmatpush1.msra.mxu0 %v1130
  %1196 = vmatprep.subr.mxu0 %v1133
  %1197 = vmatpush1.msra.mxu0 %v1132
  %1198 = vmatprep.subr.mxu0 %v1135
  %1199 = vmatpush1.msra.mxu0 %v1134
  %1200 = vmatprep.mubr.f32.mxu0 %v1060
  %1201 = vmatmul.mubr.f32.gmra.mrb[0].mxu0 %v1057
  %v1202 = vpop.f32.mrb[0].mxu0
  %v1203 = vadd.f32 0.0, %v1202
  %v1204 = vpop.f32.mrb[0].mxu0
  %v1205 = vadd.f32 0.0, %v1204
  %1206 = vmatprep.mubr.f32.mxu0 %v1066
  %1207 = vmatmul.mubr.f32.gmra.mrb[0].mxu0 %v1063
  %v1208 = vpop.f32.mrb[0].mxu0
  %v1209 = vadd.f32 0.0, %v1208
  %v1210 = vpop.f32.mrb[0].mxu0
  %v1211 = vadd.f32 0.0, %v1210
  %1212 = vdwg.mxu0
  %v1213 = vadd.f32 %v1029, %v1203
  %v1214 = vadd.f32 %v1031, %v1205
  %v1215 = vadd.f32 %v1035, %v1209
  %v1216 = vadd.f32 %v1037, %v1211
  %v1217 = vld [vmem:[%s2 + $0x2] sm:$0x1]
  %v1218 = vld [vmem:[%s2 + $0x3] sm:$0x1]
  %v1219 = vadd.f32 %v1213, %v1215
  %v1220 = vrot.slane %v1219, 4
  %v1221 = vadd.f32 %v1219, %v1220
  %v1222 = vrot.slane %v1221, 2
  %v1223 = vadd.f32 %v1221, %v1222
  %v1224 = vrot.slane %v1223, 1
  %v1225 = vadd.f32 %v1223, %v1224
  %v1226 = vadd.f32 %v1214, %v1216
  %v1227 = vrot.slane %v1226, 4
  %v1228 = vadd.f32 %v1226, %v1227
  %v1229 = vrot.slane %v1228, 2
  %v1230 = vadd.f32 %v1228, %v1229
  %v1231 = vrot.slane %v1230, 1
  %v1232 = vadd.f32 %v1230, %v1231
  %v1233 = vmul.f32 %v1213, %v1213
  %v1234 = vmul.f32 %v1214, %v1214
  %v1235 = vmul.f32 %v1215, %v1215
  %v1236 = vmul.f32 %v1216, %v1216
  %v1237 = vadd.f32 %v1233, %v1235
  %v1238 = vrot.slane %v1237, 4
  %v1239 = vadd.f32 %v1237, %v1238
  %v1240 = vrot.slane %v1239, 2
  %v1241 = vadd.f32 %v1239, %v1240
  %v1242 = vrot.slane %v1241, 1
  %v1243 = vadd.f32 %v1241, %v1242
  %v1244 = vadd.f32 %v1234, %v1236
  %v1245 = vrot.slane %v1244, 4
  %v1246 = vadd.f32 %v1244, %v1245
  %v1247 = vrot.slane %v1246, 2
  %v1248 = vadd.f32 %v1246, %v1247
  %v1249 = vrot.slane %v1248, 1
  %v1250 = vadd.f32 %v1248, %v1249
  %1252 = vrot.lane.b32.xlu0 %v1225, 96
  %v1253 = vpop.permute.xlu0 %1252
  %v1255 = vadd.f32 %v1225, %v1253
  %1257 = vrot.lane.b32.xlu0 %v1243, 96
  %v1258 = vpop.permute.xlu0 %1257
  %v1260 = vadd.f32 %v1243, %v1258
  %1261 = vrot.lane.b32.xlu0 %v1225, 64
  %v1262 = vpop.permute.xlu0 %1261
  %v1264 = vadd.f32 %v1255, %v1262
  %1265 = vrot.lane.b32.xlu0 %v1243, 64
  %v1266 = vpop.permute.xlu0 %1265
  %v1268 = vadd.f32 %v1260, %v1266
  %1269 = vrot.lane.b32.xlu0 %v1225, 32
  %v1270 = vpop.permute.xlu0 %1269
  %v1272 = vadd.f32 %v1264, %v1270
  %1273 = vrot.lane.b32.xlu0 %v1243, 32
  %v1274 = vpop.permute.xlu0 %1273
  %v1276 = vadd.f32 %v1268, %v1274
  %v1277 = vadd.f32 %v1272, %v1232
  %v1278 = vadd.f32 %v1276, %v1250
  %1280 = vrot.lane.b32.xlu0 %v1232, 96
  %v1281 = vpop.permute.xlu0 %1280
  %v1283 = vadd.f32 %v1277, %v1281
  %1285 = vrot.lane.b32.xlu0 %v1250, 96
  %v1286 = vpop.permute.xlu0 %1285
  %v1288 = vadd.f32 %v1278, %v1286
  %1289 = vrot.lane.b32.xlu0 %v1232, 64
  %v1290 = vpop.permute.xlu0 %1289
  %v1292 = vadd.f32 %v1283, %v1290
  %1293 = vrot.lane.b32.xlu0 %v1250, 64
  %v1294 = vpop.permute.xlu0 %1293
  %v1296 = vadd.f32 %v1288, %v1294
  %1297 = vrot.lane.b32.xlu0 %v1232, 32
  %v1298 = vpop.permute.xlu0 %1297
  %v1300 = vadd.f32 %v1292, %v1298
  %1301 = vrot.lane.b32.xlu0 %v1250, 32
  %v1302 = vpop.permute.xlu0 %1301
  %v1304 = vadd.f32 %v1296, %v1302
  %v1305 = vmul.f32 %v1300, 0.0078125
  %v1306 = vmul.f32 %v1304, 0.0078125
  %v1307 = vmul.f32 %v1305, %v1305
  %v1308 = vsub.f32 %v1306, %v1307
  %v1309 = vmax.f32 %v1308, 0.0
  %v1310 = vadd.f32 %v1309, 1e-05
  %v1311 = vrsqrt.pop %v1310
  %v1312 = vmul.f32 %v1311, %v1217
  %v1313 = vmul.f32 %v1305, %v1312
  %v1314 = vsub.f32 %v1218, %v1313
  %1316 = vrot.lane.b32.xlu0 %v1312, 32
  %v1317 = vpop.permute.xlu0 %1316
  %1319 = vrot.lane.b32.xlu0 %v1312, 64
  %v1320 = vpop.permute.xlu0 %1319
  %1322 = vrot.lane.b32.xlu0 %v1312, 96
  %v1323 = vpop.permute.xlu0 %1322
  %v1325 = vsel %vm660, %v1312, %v1317
  %v1326 = vsel %vm662, %v1325, %v1320
  %v1327 = vsel %vm664, %v1326, %v1323
  %1329 = vrot.lane.b32.xlu0 %v1314, 32
  %v1330 = vpop.permute.xlu0 %1329
  %1332 = vrot.lane.b32.xlu0 %v1314, 64
  %v1333 = vpop.permute.xlu0 %1332
  %1335 = vrot.lane.b32.xlu0 %v1314, 96
  %v1336 = vpop.permute.xlu0 %1335
  %v1338 = vsel %vm660, %v1314, %v1330
  %v1339 = vsel %vm662, %v1338, %v1333
  %v1340 = vsel %vm664, %v1339, %v1336
  %v1341 = vlaneseq
  %v1342 = vshrl.u32 %v1341, 7
  %v1343 = vsub.s32 0, %v1342
  %v1344 = vrot.slane %v1327, %v1343
  %v1345 = vmul.f32 %v1213, %v1344
  %v1346 = vmul.f32 %v1214, %v1344
  %v1347 = vmul.f32 %v1215, %v1344
  %v1348 = vmul.f32 %v1216, %v1344
  %v1349 = vlaneseq
  %v1350 = vshrl.u32 %v1349, 7
  %v1351 = vsub.s32 0, %v1350
  %v1352 = vrot.slane %v1340, %v1351
  %v1353 = vadd.f32 %v1345, %v1352
  %v1354 = vadd.f32 %v1346, %v1352
  %v1355 = vadd.f32 %v1347, %v1352
  %v1356 = vadd.f32 %v1348, %v1352
  %v1357 = vmax.f32 %v1353, 0.0
  %v1358 = vmax.f32 %v1354, 0.0
  %v1359 = vmax.f32 %v1355, 0.0
  %v1360 = vmax.f32 %v1356, 0.0
  %v1361 = vadd.f32 %v1357, %v29
  %v1362 = vadd.f32 %v1358, %v30
  %v1363 = vadd.f32 %v1359, %v31
  %v1364 = vadd.f32 %v1360, %v32
  %1365 = vst [vmem:[%s3] sm:$0xff] %v1361
  %1366 = vst [vmem:[%s3 + $0x8] sm:$0xff] %v1362
  %1367 = vst [vmem:[%s3 + $0x10] sm:$0xff] %v1363
  %1368 = vst [vmem:[%s3 + $0x18] sm:$0xff] %v1364
  // Predicated region
  $region14: #{residual_block.1} parent=0 // pred_check
    _
  $region15: #{residual_block.1} parent=0 // pred_check_branch
    %1370 = sbr.rel (0) target = $region17
  $region16: #{residual_block.1} parent=0 // pred_region
    _
  $region17: #{residual_block.1} parent=0 // pred_fallthru
    _
  // Predicated region
  $region18: #{residual_block.1} parent=0 // pred_check
    _
  $region19: #{residual_block.1} parent=0 // pred_check_branch
    %1372 = sbr.rel (0) target = $region21
  $region20: #{residual_block.1} parent=0 // pred_region
    _
  $region21: #{residual_block.1} parent=0 // pred_fallthru
    _

</llo_original>
